<compile_context>
chip_gen: v6e
topology: v6e:2x2x1
jax: 0.10.0
libtpu: 0.0.40
codegen_flags: <defaults>
</compile_context>

<pallas_src>
import jax
import jax.numpy as jnp
from jax.experimental import pallas as pl
from jax.experimental.pallas import tpu as pltpu


def concat_model_kernel(x1_ref, x2_ref, wf_ref, bf_ref,
                        weh_ref, wex_ref, be_ref, y_ref):
    # front: Linear(D1 -> H) + ReLU   (bf16 MXU matmul, f32 accumulation)
    h = jnp.dot(x1_ref[...], wf_ref[...], preferred_element_type=jnp.float32)
    h = jnp.maximum(h + bf_ref[...], 0.0)

    # end: Linear(H + D2 -> O) with the concat removed by splitting the
    # contraction:   y = h @ W_end[:H] + x2 @ W_end[H:] + b_end
    y = jnp.dot(h.astype(weh_ref.dtype), weh_ref[...],
                preferred_element_type=jnp.float32)
    y = y + jnp.dot(x2_ref[...], wex_ref[...],
                    preferred_element_type=jnp.float32)
    y = y + be_ref[...]
    y_ref[...] = y.astype(y_ref.dtype)


def _batch_tile(B, tm_max):
    """Largest possible batch tile, but keep >=2 grid steps when the batch is
    big enough so v7x's two TensorCores both get work."""
    if B <= 8:
        return B
    tile = min(tm_max, B)                       # whole batch if it fits the cap
    if pl.cdiv(B, tile) < 2 and B >= 256:       # split in two for v7x megacore
        tile = (((B + 1) // 2) + 7) // 8 * 8    # ~B/2, rounded up to sublanes
    return tile


def concat_new_model(x1, x2, w_front, b_front, w_end, b_end, *, tm=512):
    B, D1 = x1.shape
    _, D2 = x2.shape
    H = w_front.shape[1]
    O = w_end.shape[1]
    out_dtype = x1.dtype

    # Host-side prep: pre-split the end-layer weight (no in-kernel concat) and
    # cast all matmul operands to bf16; biases stay f32 for the epilogue.
    w_end_h = w_end[:H].astype(jnp.bfloat16)      # (H, O)
    w_end_x2 = w_end[H:].astype(jnp.bfloat16)     # (D2, O)
    w_front_b = w_front.astype(jnp.bfloat16)      # (D1, H)
    x1_b = x1.astype(jnp.bfloat16)
    x2_b = x2.astype(jnp.bfloat16)
    b_front_f = b_front.astype(jnp.float32)       # (1, H)
    b_end_f = b_end.astype(jnp.float32)           # (1, O)

    tile = _batch_tile(B, max(8, (tm // 8) * 8))
    nb = pl.cdiv(B, tile)                         # ragged last block is fine

    # Activations / output tile over the batch grid axis; parameters use a
    # constant index_map so they are DMA'd once and stay VMEM-resident.
    x_spec = lambda d: pl.BlockSpec((tile, d), lambda i: (i, 0))
    w_spec = lambda r, c: pl.BlockSpec((r, c), lambda i: (0, 0))

    # Explicit VMEM budget (v5e's default scoped limit is only 16 MiB):
    # double-buffered activation/output tiles + parameters (conservatively
    # counted double-buffered as well).
    vmem_needed = (
        2 * tile * (D1 + D2) * 2                  # x1/x2 tiles (bf16)
        + 2 * tile * O * 4                        # output tile (f32)
        + 2 * (D1 * H + H * O + D2 * O) * 2       # weights (bf16)
        + 2 * (H + O) * 4                         # biases (f32)
    )
    vmem_limit = int(min(max(2 * vmem_needed, 32 << 20), 64 << 20))

    flops = 2 * B * (D1 * H + (H + D2) * O)
    bytes_accessed = (
        B * (D1 + D2) * 2 + B * O * 4
        + (D1 * H + H * O + D2 * O) * 2 + (H + O) * 4
    )

    return pl.pallas_call(
        concat_model_kernel,
        out_shape=jax.ShapeDtypeStruct((B, O), out_dtype),
        grid_spec=pl.GridSpec(
            grid=(nb,),
            in_specs=[
                x_spec(D1),        # x1 tile
                x_spec(D2),        # x2 tile
                w_spec(D1, H),     # W_front    (VMEM-resident)
                w_spec(1, H),      # b_front    (VMEM-resident)
                w_spec(H, O),      # W_end[:H]  (VMEM-resident)
                w_spec(D2, O),     # W_end[H:]  (VMEM-resident)
                w_spec(1, O),      # b_end      (VMEM-resident)
            ],
            out_specs=x_spec(O),
        ),
        compiler_params=pltpu.CompilerParams(
            # Batch axis is embarrassingly parallel -> sharded across the two
            # TensorCores on v7x; harmless on v5e/v6e (1 TC).
            dimension_semantics=("parallel",),
            vmem_limit_bytes=vmem_limit,
        ),
        cost_estimate=pl.CostEstimate(
            flops=flops, transcendentals=0, bytes_accessed=bytes_accessed),
    )(x1_b, x2_b, w_front_b, b_front_f, w_end_h, w_end_x2, b_end_f)


def reference(x1, x2, w_front, b_front, w_end, b_end):
    h = jnp.maximum(x1 @ w_front + b_front, 0.0)
    cat = jnp.concatenate([h, x2], axis=-1)
    return cat @ w_end + b_end


if __name__ == "__main__":
    # Lane-aligned feature dims (multiples of 128); batch large enough that the
    # big-tile path is exercised: 2 grid steps of 512 rows each (~1 MiB total
    # activations, still tiny).
    B, D1, H, D2, O = 1024, 128, 128, 128, 128

    key = jax.random.PRNGKey(0)
    k1, k2, k3, k4, k5, k6 = jax.random.split(key, 6)

    x1 = jax.random.normal(k1, (B, D1), dtype=jnp.float32)
    x2 = jax.random.normal(k2, (B, D2), dtype=jnp.float32)

    # Deterministic synthetic parameters (no checkpoint load).
    w_front = jax.random.normal(k3, (D1, H), dtype=jnp.float32) * (1.0 / jnp.sqrt(D1))
    b_front = jax.random.normal(k4, (1, H), dtype=jnp.float32) * 0.01
    w_end = jax.random.normal(k5, (H + D2, O), dtype=jnp.float32) * (1.0 / jnp.sqrt(H + D2))
    b_end = jax.random.normal(k6, (1, O), dtype=jnp.float32) * 0.01

    y = concat_new_model(x1, x2, w_front, b_front, w_end, b_end)
    y = jax.block_until_ready(y)

    y_ref = reference(x1, x2, w_front, b_front, w_end, b_end)
    assert y.shape == (B, O)
    # bf16 MXU inputs (f32 accumulation) loosen the achievable tolerance vs the
    # full-f32 reference to ~1e-2 level.
    assert jnp.allclose(y, y_ref, atol=2e-2, rtol=2e-2), "mismatch vs JAX reference"

    print("KERNEL_OK")
</pallas_src>

<mosaic_0001>
module attributes {stable_mosaic.version = 11 : i64} {
  func.func @concat_model_kernel(%arg0: i32, %arg1: memref<512x128xbf16, #tpu.memory_space<vmem>>, %arg2: memref<512x128xbf16, #tpu.memory_space<vmem>>, %arg3: memref<128x128xbf16, #tpu.memory_space<vmem>>, %arg4: memref<1x128xf32, #tpu.memory_space<vmem>>, %arg5: memref<128x128xbf16, #tpu.memory_space<vmem>>, %arg6: memref<128x128xbf16, #tpu.memory_space<vmem>>, %arg7: memref<1x128xf32, #tpu.memory_space<vmem>>, %arg8: memref<512x128xf32, #tpu.memory_space<vmem>>) attributes {dimension_semantics = [#tpu.dimension_semantics<parallel>], iteration_bounds = array<i64: 2>, scalar_prefetch = 0 : i64, scratch_operands = 0 : i64, tpu.core_type = #tpu.core_type<tc>, window_params = [{transform_indices = @transform_0, window_bounds = array<i64: 512, 128>}, {transform_indices = @transform_1, window_bounds = array<i64: 512, 128>}, {pipeline_mode = #tpu.pipeline_mode<synchronous>, transform_indices = @transform_2, window_bounds = array<i64: 128, 128>}, {pipeline_mode = #tpu.pipeline_mode<synchronous>, transform_indices = @transform_3, window_bounds = array<i64: 1, 128>}, {pipeline_mode = #tpu.pipeline_mode<synchronous>, transform_indices = @transform_4, window_bounds = array<i64: 128, 128>}, {pipeline_mode = #tpu.pipeline_mode<synchronous>, transform_indices = @transform_5, window_bounds = array<i64: 128, 128>}, {pipeline_mode = #tpu.pipeline_mode<synchronous>, transform_indices = @transform_6, window_bounds = array<i64: 1, 128>}, {transform_indices = @transform_7, window_bounds = array<i64: 512, 128>}]} {
    %c0 = arith.constant 0 : index
    %c0_0 = arith.constant 0 : index
    %0 = vector.load %arg1[%c0, %c0_0] : memref<512x128xbf16, #tpu.memory_space<vmem>>, vector<512x128xbf16>
    %c0_1 = arith.constant 0 : index
    %c0_2 = arith.constant 0 : index
    %1 = vector.load %arg3[%c0_1, %c0_2] : memref<128x128xbf16, #tpu.memory_space<vmem>>, vector<128x128xbf16>
    %cst = arith.constant dense<0.000000e+00> : vector<512x128xf32>
    %2 = tpu.matmul %0, %1, %cst {dimension_numbers = #tpu.dot_dimension_numbers<[1], [0], [0], [1], [0, 0, 1, 1], [], []>} : vector<512x128xbf16>, vector<128x128xbf16>, vector<512x128xf32> -> vector<512x128xf32>
    %c0_3 = arith.constant 0 : index
    %c0_4 = arith.constant 0 : index
    %3 = vector.load %arg4[%c0_3, %c0_4] : memref<1x128xf32, #tpu.memory_space<vmem>>, vector<1x128xf32>
    %4 = vector.broadcast %3 : vector<1x128xf32> to vector<512x128xf32>
    %5 = arith.addf %2, %4 : vector<512x128xf32>
    %cst_5 = arith.constant 0.000000e+00 : f32
    %6 = vector.broadcast %cst_5 : f32 to vector<512x128xf32>
    %7 = arith.maximumf %5, %6 : vector<512x128xf32>
    %8 = arith.truncf %7 : vector<512x128xf32> to vector<512x128xbf16>
    %c0_6 = arith.constant 0 : index
    %c0_7 = arith.constant 0 : index
    %9 = vector.load %arg5[%c0_6, %c0_7] : memref<128x128xbf16, #tpu.memory_space<vmem>>, vector<128x128xbf16>
    %cst_8 = arith.constant dense<0.000000e+00> : vector<512x128xf32>
    %10 = tpu.matmul %8, %9, %cst_8 {dimension_numbers = #tpu.dot_dimension_numbers<[1], [0], [0], [1], [0, 0, 1, 1], [], []>} : vector<512x128xbf16>, vector<128x128xbf16>, vector<512x128xf32> -> vector<512x128xf32>
    %c0_9 = arith.constant 0 : index
    %c0_10 = arith.constant 0 : index
    %11 = vector.load %arg2[%c0_9, %c0_10] : memref<512x128xbf16, #tpu.memory_space<vmem>>, vector<512x128xbf16>
    %c0_11 = arith.constant 0 : index
    %c0_12 = arith.constant 0 : index
    %12 = vector.load %arg6[%c0_11, %c0_12] : memref<128x128xbf16, #tpu.memory_space<vmem>>, vector<128x128xbf16>
    %cst_13 = arith.constant dense<0.000000e+00> : vector<512x128xf32>
    %13 = tpu.matmul %11, %12, %cst_13 {dimension_numbers = #tpu.dot_dimension_numbers<[1], [0], [0], [1], [0, 0, 1, 1], [], []>} : vector<512x128xbf16>, vector<128x128xbf16>, vector<512x128xf32> -> vector<512x128xf32>
    %14 = arith.addf %10, %13 : vector<512x128xf32>
    %c0_14 = arith.constant 0 : index
    %c0_15 = arith.constant 0 : index
    %15 = vector.load %arg7[%c0_14, %c0_15] : memref<1x128xf32, #tpu.memory_space<vmem>>, vector<1x128xf32>
    %16 = vector.broadcast %15 : vector<1x128xf32> to vector<512x128xf32>
    %17 = arith.addf %14, %16 : vector<512x128xf32>
    %c0_16 = arith.constant 0 : index
    %c0_17 = arith.constant 0 : index
    %18 = vector.load %arg8[%c0_16, %c0_17] : memref<512x128xf32, #tpu.memory_space<vmem>>, vector<512x128xf32>
    tpu.vector_store %arg8[%c0_16, %c0_17], %17 {strides = array<i32>} : memref<512x128xf32, #tpu.memory_space<vmem>>, vector<512x128xf32>,
    return
  }
  func.func @transform_0(%arg0: i32) -> (i32, i32) {
    %c0_i32 = arith.constant 0 : i32
    %c0_i32_0 = arith.constant 0 : i32
    return %arg0, %c0_i32 : i32, i32
  }
  func.func @transform_1(%arg0: i32) -> (i32, i32) {
    %c0_i32 = arith.constant 0 : i32
    %c0_i32_0 = arith.constant 0 : i32
    return %arg0, %c0_i32 : i32, i32
  }
  func.func @transform_2(%arg0: i32) -> (i32, i32) {
    %c0_i32 = arith.constant 0 : i32
    %c0_i32_0 = arith.constant 0 : i32
    %c0_i32_1 = arith.constant 0 : i32
    return %c0_i32, %c0_i32_0 : i32, i32
  }
  func.func @transform_3(%arg0: i32) -> (i32, i32) {
    %c0_i32 = arith.constant 0 : i32
    %c0_i32_0 = arith.constant 0 : i32
    %c0_i32_1 = arith.constant 0 : i32
    return %c0_i32, %c0_i32_0 : i32, i32
  }
  func.func @transform_4(%arg0: i32) -> (i32, i32) {
    %c0_i32 = arith.constant 0 : i32
    %c0_i32_0 = arith.constant 0 : i32
    %c0_i32_1 = arith.constant 0 : i32
    return %c0_i32, %c0_i32_0 : i32, i32
  }
  func.func @transform_5(%arg0: i32) -> (i32, i32) {
    %c0_i32 = arith.constant 0 : i32
    %c0_i32_0 = arith.constant 0 : i32
    %c0_i32_1 = arith.constant 0 : i32
    return %c0_i32, %c0_i32_0 : i32, i32
  }
  func.func @transform_6(%arg0: i32) -> (i32, i32) {
    %c0_i32 = arith.constant 0 : i32
    %c0_i32_0 = arith.constant 0 : i32
    %c0_i32_1 = arith.constant 0 : i32
    return %c0_i32, %c0_i32_0 : i32, i32
  }
  func.func @transform_7(%arg0: i32) -> (i32, i32) {
    %c0_i32 = arith.constant 0 : i32
    %c0_i32_0 = arith.constant 0 : i32
    return %arg0, %c0_i32 : i32, i32
  }
}

</mosaic_0001>

<llo_original>
// kernel: tpu_custom_call.1
$region0: #{tpu_custom_call.1}
  #allocation0 [shape = 'u32[]', space=smem, size = 0x4, offset = 0x4, fixed_abs, tag = 'smem constant byte address 0x4 - core index']
  #allocation1 [shape = 'u32[144,128]{1,0:T(1,128)}', space=vmem, size = 0x12000, scoped, tag = 'internal scratch']
  %s0 = inlined_call_operand.hbm [shape: bf16[1024,128], index: 0, kind: input, shape index: {}]
  %s1 = inlined_call_operand.hbm [shape: bf16[1024,128], index: 1, kind: input, shape index: {}]
  %s2 = inlined_call_operand.hbm [shape: bf16[128,128], index: 2, kind: input, shape index: {}]
  %s3 = inlined_call_operand.vmem [shape: f32[1,128], index: 3, kind: input, shape index: {}]
  %s4 = inlined_call_operand.hbm [shape: bf16[128,128], index: 4, kind: input, shape index: {}]
  %s5 = inlined_call_operand.hbm [shape: bf16[128,128], index: 5, kind: input, shape index: {}]
  %s6 = inlined_call_operand.vmem [shape: f32[1,128], index: 6, kind: input, shape index: {}]
  %s7 = inlined_call_operand.hbm [shape: f32[1024,128], index: 7, kind: output, shape index: {}]
  %s8 = sld [smem:[#allocation0]]
  $region81: #{tpu_custom_call.1} parent=0
    _
  %s10 = ssub.s32 1, %s8
  %s11 = scalar_select 0, %s10, %s8
  $region1: #{tpu_custom_call.1} parent=0
    #allocation2 [shape = 'u8[262144]{0}', space=vmem, size = 0x40000, scoped, tag = 'input window, operand 0']
    #allocation3 [shape = 's32[2]{0}', space=sflag, size = 0x8, scoped, tag = 'scoped memory for tpu_custom_call.1']
    #allocation4 [shape = 's32[2]{0}', space=sflag, size = 0x8, scoped, tag = 'scoped memory for tpu_custom_call.1']
    #allocation5 [shape = 'u8[262144]{0}', space=vmem, size = 0x40000, scoped, tag = 'input window, operand 1']
    #allocation6 [shape = 's32[2]{0}', space=sflag, size = 0x8, scoped, tag = 'scoped memory for tpu_custom_call.1']
    #allocation7 [shape = 'u8[32768]{0}', space=vmem, size = 0x8000, scoped, tag = 'input window, operand 2, single buffered']
    #allocation8 [shape = 'u8[32768]{0}', space=vmem, size = 0x8000, scoped, tag = 'input window, operand 4, single buffered']
    #allocation9 [shape = 's32[1]{0}', space=sflag, size = 0x4, scoped, tag = 'scoped memory for tpu_custom_call.1']
    #allocation10 [shape = 'u8[32768]{0}', space=vmem, size = 0x8000, scoped, tag = 'input window, operand 5, single buffered']
    #allocation11 [shape = 'u8[524288]{0}', space=vmem, size = 0x80000, scoped, tag = 'output window, operand 0']
    %12 = vsyncpa [#allocation3], 0
    %s13 = scalar_lea.sflag [#allocation3], 1
    %14 = vsyncpa %s13, 0
    %15 = vsyncpa [#allocation6], 0
    %s16 = scalar_lea.sflag [#allocation6], 1
    %17 = vsyncpa %s16, 0
    %18 = vsyncpa [#allocation9], 0
    %19 = vsyncpa [#allocation4], 0
    %s20 = scalar_lea.sflag [#allocation4], 1
    %21 = vsyncpa %s20, 0
    loop: start=0, step=1, limit=4
    $region2: #{tpu_custom_call.1} parent=1 // loop_pre_header
      _
    $region3: #{tpu_custom_call.1} parent=1 // loop_header
      %s23 = sphi 0, %s27
      %p24 = scmp.ge.s32.totalorder %s23, 4
      %s33 = sphi 0, %s35
      %s36 = sphi 0, %s33
      %s37 = sphi 0, %s36
      %s53 = sphi 0, %s37
      %s59 = sphi 0, %s61
      %s62 = sphi 0, %s59
      %s63 = sphi 0, %s62
      %s79 = sphi 0, %s63
      %s83 = sphi 0, %s83
      %s85 = sphi 0, %s83
      %s86 = sphi 0, %s85
      %s100 = sphi 0, %s86
      %s104 = sphi 0, %s104
      %s106 = sphi 0, %s104
      %s107 = sphi 0, %s106
      %s121 = sphi 0, %s107
      %s125 = sphi 0, %s125
      %s127 = sphi 0, %s125
      %s128 = sphi 0, %s127
      %s142 = sphi 0, %s128
      %s146 = sphi 0, %s146
      %s148 = sphi 0, %s146
      %s149 = sphi 0, %s148
      %s163 = sphi 0, %s149
      %s167 = sphi 0, %s167
      %s169 = sphi 0, %s167
      %s170 = sphi 0, %s169
      %s184 = sphi 0, %s170
      %s190 = sphi 0, %s192
      %s193 = sphi 0, %s190
      %s194 = sphi 0, %s193
      %s210 = sphi 0, %s194
    $region4: #{tpu_custom_call.1} parent=1 // loop_header_branch
      %26 = sbr.rel (%p24) target = $region8
    $region5: #{tpu_custom_call.1} parent=1 // loop_body
      %s28 = ssub.s32 %s23, 1
      %s29 = ssub.s32 %s23, 2
      %s30 = sadd.s32 %s23, 1
      %s31 = ssub.s32 %s23, %s30
      %p32 = scmp.eq.s32.totalorder %s31, 0
      %s34 = sadd.s32 %s33, 1
      %s35 = scalar_select %p32, %s33, %s34
      %p38 = pneg %p32
      %p39 = scmp.eq.s32.totalorder %s23, 1
      %p40 = por %p38, %p39
      %p41 = scmp.ne.s32.totalorder %s33, %s36
      %p42 = scmp.eq.s32.totalorder %s23, 0
      %p43 = por %p41, %p42
      %p44 = scmp.ne.s32.totalorder %s33, %s36
      %p45 = scmp.eq.s32.totalorder %s28, 1
      %p46 = por %p44, %p45
      %p47 = scmp.ne.s32.totalorder %s36, %s37
      %p48 = scmp.eq.s32.totalorder %s28, 0
      %p49 = por %p47, %p48
      %p50 = scmp.ne.s32.totalorder %s36, %s37
      %p51 = scmp.eq.s32.totalorder %s29, 1
      %p52 = por %p50, %p51
      %p54 = scmp.ne.s32.totalorder %s37, %s53
      %p55 = scmp.eq.s32.totalorder %s29, 0
      %p56 = por %p54, %p55
      %s57 = ssub.s32 %s23, %s30
      %p58 = scmp.eq.s32.totalorder %s57, 0
      %s60 = sadd.s32 %s59, 1
      %s61 = scalar_select %p58, %s59, %s60
      %p64 = pneg %p58
      %p65 = scmp.eq.s32.totalorder %s23, 1
      %p66 = por %p64, %p65
      %p67 = scmp.ne.s32.totalorder %s59, %s62
      %p68 = scmp.eq.s32.totalorder %s23, 0
      %p69 = por %p67, %p68
      %p70 = scmp.ne.s32.totalorder %s59, %s62
      %p71 = scmp.eq.s32.totalorder %s28, 1
      %p72 = por %p70, %p71
      %p73 = scmp.ne.s32.totalorder %s62, %s63
      %p74 = scmp.eq.s32.totalorder %s28, 0
      %p75 = por %p73, %p74
      %p76 = scmp.ne.s32.totalorder %s62, %s63
      %p77 = scmp.eq.s32.totalorder %s29, 1
      %p78 = por %p76, %p77
      %p80 = scmp.ne.s32.totalorder %s63, %s79
      %p81 = scmp.eq.s32.totalorder %s29, 0
      %p82 = por %p80, %p81
      %s84 = sadd.s32 %s83, 1
      %p87 = scmp.eq.s32.totalorder %s23, 1
      %p88 = scmp.ne.s32.totalorder %s83, %s85
      %p89 = scmp.eq.s32.totalorder %s23, 0
      %p90 = por %p88, %p89
      %p91 = scmp.ne.s32.totalorder %s83, %s85
      %p92 = scmp.eq.s32.totalorder %s28, 1
      %p93 = por %p91, %p92
      %p94 = scmp.ne.s32.totalorder %s85, %s86
      %p95 = scmp.eq.s32.totalorder %s28, 0
      %p96 = por %p94, %p95
      %p97 = scmp.ne.s32.totalorder %s85, %s86
      %p98 = scmp.eq.s32.totalorder %s29, 1
      %p99 = por %p97, %p98
      %p101 = scmp.ne.s32.totalorder %s86, %s100
      %p102 = scmp.eq.s32.totalorder %s29, 0
      %p103 = por %p101, %p102
      %s105 = sadd.s32 %s104, 1
      %p108 = scmp.eq.s32.totalorder %s23, 1
      %p109 = scmp.ne.s32.totalorder %s104, %s106
      %p110 = scmp.eq.s32.totalorder %s23, 0
      %p111 = por %p109, %p110
      %p112 = scmp.ne.s32.totalorder %s104, %s106
      %p113 = scmp.eq.s32.totalorder %s28, 1
      %p114 = por %p112, %p113
      %p115 = scmp.ne.s32.totalorder %s106, %s107
      %p116 = scmp.eq.s32.totalorder %s28, 0
      %p117 = por %p115, %p116
      %p118 = scmp.ne.s32.totalorder %s106, %s107
      %p119 = scmp.eq.s32.totalorder %s29, 1
      %p120 = por %p118, %p119
      %p122 = scmp.ne.s32.totalorder %s107, %s121
      %p123 = scmp.eq.s32.totalorder %s29, 0
      %p124 = por %p122, %p123
      %s126 = sadd.s32 %s125, 1
      %p129 = scmp.eq.s32.totalorder %s23, 1
      %p130 = scmp.ne.s32.totalorder %s125, %s127
      %p131 = scmp.eq.s32.totalorder %s23, 0
      %p132 = por %p130, %p131
      %p133 = scmp.ne.s32.totalorder %s125, %s127
      %p134 = scmp.eq.s32.totalorder %s28, 1
      %p135 = por %p133, %p134
      %p136 = scmp.ne.s32.totalorder %s127, %s128
      %p137 = scmp.eq.s32.totalorder %s28, 0
      %p138 = por %p136, %p137
      %p139 = scmp.ne.s32.totalorder %s127, %s128
      %p140 = scmp.eq.s32.totalorder %s29, 1
      %p141 = por %p139, %p140
      %p143 = scmp.ne.s32.totalorder %s128, %s142
      %p144 = scmp.eq.s32.totalorder %s29, 0
      %p145 = por %p143, %p144
      %s147 = sadd.s32 %s146, 1
      %p150 = scmp.eq.s32.totalorder %s23, 1
      %p151 = scmp.ne.s32.totalorder %s146, %s148
      %p152 = scmp.eq.s32.totalorder %s23, 0
      %p153 = por %p151, %p152
      %p154 = scmp.ne.s32.totalorder %s146, %s148
      %p155 = scmp.eq.s32.totalorder %s28, 1
      %p156 = por %p154, %p155
      %p157 = scmp.ne.s32.totalorder %s148, %s149
      %p158 = scmp.eq.s32.totalorder %s28, 0
      %p159 = por %p157, %p158
      %p160 = scmp.ne.s32.totalorder %s148, %s149
      %p161 = scmp.eq.s32.totalorder %s29, 1
      %p162 = por %p160, %p161
      %p164 = scmp.ne.s32.totalorder %s149, %s163
      %p165 = scmp.eq.s32.totalorder %s29, 0
      %p166 = por %p164, %p165
      %s168 = sadd.s32 %s167, 1
      %p171 = scmp.eq.s32.totalorder %s23, 1
      %p172 = scmp.ne.s32.totalorder %s167, %s169
      %p173 = scmp.eq.s32.totalorder %s23, 0
      %p174 = por %p172, %p173
      %p175 = scmp.ne.s32.totalorder %s167, %s169
      %p176 = scmp.eq.s32.totalorder %s28, 1
      %p177 = por %p175, %p176
      %p178 = scmp.ne.s32.totalorder %s169, %s170
      %p179 = scmp.eq.s32.totalorder %s28, 0
      %p180 = por %p178, %p179
      %p181 = scmp.ne.s32.totalorder %s169, %s170
      %p182 = scmp.eq.s32.totalorder %s29, 1
      %p183 = por %p181, %p182
      %p185 = scmp.ne.s32.totalorder %s170, %s184
      %p186 = scmp.eq.s32.totalorder %s29, 0
      %p187 = por %p185, %p186
      %s188 = ssub.s32 %s23, %s30
      %p189 = scmp.eq.s32.totalorder %s188, 0
      %s191 = sadd.s32 %s190, 1
      %s192 = scalar_select %p189, %s190, %s191
      %p195 = pneg %p189
      %p196 = scmp.eq.s32.totalorder %s23, 1
      %p197 = por %p195, %p196
      %p198 = scmp.ne.s32.totalorder %s190, %s193
      %p199 = scmp.eq.s32.totalorder %s23, 0
      %p200 = por %p198, %p199
      %p201 = scmp.ne.s32.totalorder %s190, %s193
      %p202 = scmp.eq.s32.totalorder %s28, 1
      %p203 = por %p201, %p202
      %p204 = scmp.ne.s32.totalorder %s193, %s194
      %p205 = scmp.eq.s32.totalorder %s28, 0
      %p206 = por %p204, %p205
      %p207 = scmp.ne.s32.totalorder %s193, %s194
      %p208 = scmp.eq.s32.totalorder %s29, 1
      %p209 = por %p207, %p208
      %p211 = scmp.ne.s32.totalorder %s194, %s210
      %p212 = scmp.eq.s32.totalorder %s29, 0
      %p213 = por %p211, %p212
      %p214 = scmp.le.s32.totalorder 1, %s23
      %p215 = scmp.lt.s32.totalorder %s23, 3
      %p216 = pnand %p214, %p215
      %p217 = pneg %p216
      // Predicated region
      $region9: #{tpu_custom_call.1} parent=5 // pred_check
        _
      $region10: #{tpu_custom_call.1} parent=5 // pred_check_branch
        %219 = sbr.rel (%p216) target = $region12
      $region11: #{tpu_custom_call.1} parent=5 // pred_region
        %s220 = ssub.s32 %s23, 1
        // Predicated region
        $region13: #{tpu_custom_call.1} parent=11 // pred_check
          %p221 = pneg %p96
        $region14: #{tpu_custom_call.1} parent=11 // pred_check_branch
          %223 = sbr.rel (%p221) target = $region16
        $region15: #{tpu_custom_call.1} parent=11 // pred_region
          %s225 = ssub.s32 1024, 1024
          %226 = vsyncadd [#allocation6], %s225
          %s227 = sshll.u32 [#allocation7], 4
          %s228 = int_to_ptr.vmem [resolvable:$true] %s227
          %233 = dma.hbm_to_vmem [thread:$0]  %s2, 1024, %s228, [#allocation6], 64, 64, 4
        $region16: #{tpu_custom_call.1} parent=11 // pred_fallthru
          _
        // Predicated region
        $region17: #{tpu_custom_call.1} parent=11 // pred_check
          %p234 = pneg %p117
        $region18: #{tpu_custom_call.1} parent=11 // pred_check_branch
          %236 = sbr.rel (%p234) target = $region20
        $region19: #{tpu_custom_call.1} parent=11 // pred_region
          _
        $region20: #{tpu_custom_call.1} parent=11 // pred_fallthru
          _
        // Predicated region
        $region21: #{tpu_custom_call.1} parent=11 // pred_check
          %p237 = pneg %p138
        $region22: #{tpu_custom_call.1} parent=11 // pred_check_branch
          %239 = sbr.rel (%p237) target = $region24
        $region23: #{tpu_custom_call.1} parent=11 // pred_region
          %s241 = ssub.s32 1024, 1024
          %242 = vsyncadd [#allocation9], %s241
          %s243 = sshll.u32 [#allocation8], 4
          %s244 = int_to_ptr.vmem [resolvable:$true] %s243
          %249 = dma.hbm_to_vmem [thread:$0]  %s4, 1024, %s244, [#allocation9], 64, 64, 4
        $region24: #{tpu_custom_call.1} parent=11 // pred_fallthru
          _
        // Predicated region
        $region25: #{tpu_custom_call.1} parent=11 // pred_check
          %p250 = pneg %p159
        $region26: #{tpu_custom_call.1} parent=11 // pred_check_branch
          %252 = sbr.rel (%p250) target = $region28
        $region27: #{tpu_custom_call.1} parent=11 // pred_region
          %s254 = ssub.s32 1024, 1024
          %255 = vsyncadd [#allocation9], %s254
          %s256 = sshll.u32 [#allocation10], 4
          %s257 = int_to_ptr.vmem [resolvable:$true] %s256
          %262 = dma.hbm_to_vmem [thread:$0]  %s5, 1024, %s257, [#allocation9], 64, 64, 4
        $region28: #{tpu_custom_call.1} parent=11 // pred_fallthru
          _
        // Predicated region
        $region29: #{tpu_custom_call.1} parent=11 // pred_check
          %p263 = pneg %p180
        $region30: #{tpu_custom_call.1} parent=11 // pred_check_branch
          %265 = sbr.rel (%p263) target = $region32
        $region31: #{tpu_custom_call.1} parent=11 // pred_region
          _
        $region32: #{tpu_custom_call.1} parent=11 // pred_fallthru
          _
      $region12: #{tpu_custom_call.1} parent=5 // pred_fallthru
        _
      %p266 = scmp.lt.s32.totalorder %s23, 2
      // Predicated region
      $region33: #{tpu_custom_call.1} parent=5 // pred_check
        %p267 = pneg %p266
      $region34: #{tpu_custom_call.1} parent=5 // pred_check_branch
        %269 = sbr.rel (%p267) target = $region36
      $region35: #{tpu_custom_call.1} parent=5 // pred_region
        // Predicated region
        $region37: #{tpu_custom_call.1} parent=35 // pred_check
          %p270 = pneg %p43
        $region38: #{tpu_custom_call.1} parent=35 // pred_check_branch
          %272 = sbr.rel (%p270) target = $region40
        $region39: #{tpu_custom_call.1} parent=35 // pred_region
          %s273 = sand.u32 %s33, 1
          %s274 = scalar_lea.sflag [#allocation3], %s273
          %s275 = sand.u32 %s33, 1
          %s276 = smul.addr %s275, 256
          %s277 = scalar_lea.vmem [#allocation2], %s276
          %s278 = smul.u32 64, %s23
          %s280 = ssub.s32 4096, 4096
          %281 = vsyncadd %s274, %s280
          %s282 = smul.addr %s278, 64
          %s283 = scalar_lea.hbm %s0, %s282
          %s284 = sshll.u32 %s277, 4
          %s285 = int_to_ptr.vmem [resolvable:$true] %s284
          %290 = dma.hbm_to_vmem [thread:$0]  %s283, 4096, %s285, %s274, 64, 64, 4
        $region40: #{tpu_custom_call.1} parent=35 // pred_fallthru
          _
        // Predicated region
        $region41: #{tpu_custom_call.1} parent=35 // pred_check
          %p291 = pneg %p69
        $region42: #{tpu_custom_call.1} parent=35 // pred_check_branch
          %293 = sbr.rel (%p291) target = $region44
        $region43: #{tpu_custom_call.1} parent=35 // pred_region
          %s294 = sand.u32 %s23, 1
          %s295 = scalar_lea.sflag [#allocation6], %s294
          %s296 = sand.u32 %s59, 1
          %s297 = smul.addr %s296, 256
          %s298 = scalar_lea.vmem [#allocation5], %s297
          %s299 = smul.u32 64, %s23
          %s301 = ssub.s32 4096, 4096
          %302 = vsyncadd %s295, %s301
          %s303 = smul.addr %s299, 64
          %s304 = scalar_lea.hbm %s1, %s303
          %s305 = sshll.u32 %s298, 4
          %s306 = int_to_ptr.vmem [resolvable:$true] %s305
          %311 = dma.hbm_to_vmem [thread:$0]  %s304, 4096, %s306, %s295, 64, 64, 4
        $region44: #{tpu_custom_call.1} parent=35 // pred_fallthru
          _
      $region36: #{tpu_custom_call.1} parent=5 // pred_fallthru
        _
      %p312 = scmp.le.s32.totalorder 1, %s23
      %p313 = scmp.lt.s32.totalorder %s23, 3
      %p314 = pnand %p312, %p313
      %p315 = pneg %p314
      // Predicated region
      $region45: #{tpu_custom_call.1} parent=5 // pred_check
        _
      $region46: #{tpu_custom_call.1} parent=5 // pred_check_branch
        %317 = sbr.rel (%p314) target = $region48
      $region47: #{tpu_custom_call.1} parent=5 // pred_region
        %s318 = ssub.s32 %s23, 1
        %s319 = sand.u32 %s36, 1
        %s320 = scalar_lea.sflag [#allocation3], %s319
        %s321 = sand.u32 %s36, 1
        %s322 = smul.addr %s321, 256
        %s323 = scalar_lea.vmem [#allocation2], %s322
        // Predicated region
        $region49: #{tpu_custom_call.1} parent=47 // pred_check
          %p324 = pneg %p49
        $region50: #{tpu_custom_call.1} parent=47 // pred_check_branch
          %326 = sbr.rel (%p324) target = $region52
        $region51: #{tpu_custom_call.1} parent=47 // pred_region
          %327 = dma.done %s320, 4096
        $region52: #{tpu_custom_call.1} parent=47 // pred_fallthru
          _
        %s328 = sand.u32 %s28, 1
        %s329 = scalar_lea.sflag [#allocation6], %s328
        %s330 = sand.u32 %s62, 1
        %s331 = smul.addr %s330, 256
        %s332 = scalar_lea.vmem [#allocation5], %s331
        // Predicated region
        $region53: #{tpu_custom_call.1} parent=47 // pred_check
          %p333 = pneg %p75
        $region54: #{tpu_custom_call.1} parent=47 // pred_check_branch
          %335 = sbr.rel (%p333) target = $region56
        $region55: #{tpu_custom_call.1} parent=47 // pred_region
          %336 = dma.done %s329, 4096
        $region56: #{tpu_custom_call.1} parent=47 // pred_fallthru
          _
        // Predicated region
        $region57: #{tpu_custom_call.1} parent=47 // pred_check
          %p337 = pneg %p96
        $region58: #{tpu_custom_call.1} parent=47 // pred_check_branch
          %339 = sbr.rel (%p337) target = $region60
        $region59: #{tpu_custom_call.1} parent=47 // pred_region
          %340 = dma.done [#allocation6], 1024
        $region60: #{tpu_custom_call.1} parent=47 // pred_fallthru
          _
        // Predicated region
        $region61: #{tpu_custom_call.1} parent=47 // pred_check
          %p341 = pneg %p138
        $region62: #{tpu_custom_call.1} parent=47 // pred_check_branch
          %343 = sbr.rel (%p341) target = $region64
        $region63: #{tpu_custom_call.1} parent=47 // pred_region
          %344 = dma.done [#allocation9], 1024
        $region64: #{tpu_custom_call.1} parent=47 // pred_fallthru
          _
        // Predicated region
        $region65: #{tpu_custom_call.1} parent=47 // pred_check
          %p345 = pneg %p159
        $region66: #{tpu_custom_call.1} parent=47 // pred_check_branch
          %347 = sbr.rel (%p345) target = $region68
        $region67: #{tpu_custom_call.1} parent=47 // pred_region
          %348 = dma.done [#allocation9], 1024
        $region68: #{tpu_custom_call.1} parent=47 // pred_fallthru
          _
        %s349 = sand.u32 %s36, 1
        %s350 = scalar_lea.sflag [#allocation3], %s349
        %s351 = sand.u32 %s36, 1
        %s352 = smul.addr %s351, 256
        %s353 = scalar_lea.vmem [#allocation2], %s352
        %p354 = pneg %p49
        %p355 = pneg %p46
        %s356 = sand.u32 %s28, 1
        %s357 = scalar_lea.sflag [#allocation6], %s356
        %s358 = sand.u32 %s62, 1
        %s359 = smul.addr %s358, 256
        %s360 = scalar_lea.vmem [#allocation5], %s359
        %p361 = pneg %p75
        %p362 = pneg %p72
        %p363 = pneg %p96
        %p364 = pneg %p93
        %p365 = pneg %p117
        %p366 = pneg %p114
        %p367 = pneg %p138
        %p368 = pneg %p135
        %p369 = pneg %p159
        %p370 = pneg %p156
        %p371 = pneg %p180
        %p372 = pneg %p177
        %p373 = pneg %p206
        %p374 = pneg %p203
        %s375 = sand.u32 %s193, 1
        %s376 = scalar_lea.sflag [#allocation4], %s375
        %s377 = sand.u32 %s193, 1
        %s378 = smul.addr %s377, 512
        %s379 = scalar_lea.vmem [#allocation11], %s378
        %s380 = smul.u32 64, %s28
        %s381 = smul.u32 64, %s28
        %s382 = smul.u32 64, %s28
        %v384 = vld [vmem:[%s323] sm:$0xf]
        %v385 = vld [vmem:[%s323 + $0x4] sm:$0xf]
        %v386 = vld [vmem:[%s323 + $0x8] sm:$0xf]
        %v387 = vld [vmem:[%s323 + $0xc] sm:$0xf]
        %v388 = vld [vmem:[%s323 + $0x10] sm:$0xf]
        %v389 = vld [vmem:[%s323 + $0x14] sm:$0xf]
        %v390 = vld [vmem:[%s323 + $0x18] sm:$0xf]
        %v391 = vld [vmem:[%s323 + $0x1c] sm:$0xf]
        %v392 = vld [vmem:[%s323 + $0x20] sm:$0xf]
        %v393 = vld [vmem:[%s323 + $0x24] sm:$0xf]
        %v394 = vld [vmem:[%s323 + $0x28] sm:$0xf]
        %v395 = vld [vmem:[%s323 + $0x2c] sm:$0xf]
        %v396 = vld [vmem:[%s323 + $0x30] sm:$0xf]
        %v397 = vld [vmem:[%s323 + $0x34] sm:$0xf]
        %v398 = vld [vmem:[%s323 + $0x38] sm:$0xf]
        %v399 = vld [vmem:[%s323 + $0x3c] sm:$0xf]
        %v400 = vld [vmem:[%s323 + $0x40] sm:$0xf]
        %v401 = vld [vmem:[%s323 + $0x44] sm:$0xf]
        %v402 = vld [vmem:[%s323 + $0x48] sm:$0xf]
        %v403 = vld [vmem:[%s323 + $0x4c] sm:$0xf]
        %v404 = vld [vmem:[%s323 + $0x50] sm:$0xf]
        %v405 = vld [vmem:[%s323 + $0x54] sm:$0xf]
        %v406 = vld [vmem:[%s323 + $0x58] sm:$0xf]
        %v407 = vld [vmem:[%s323 + $0x5c] sm:$0xf]
        %v408 = vld [vmem:[%s323 + $0x60] sm:$0xf]
        %v409 = vld [vmem:[%s323 + $0x64] sm:$0xf]
        %v410 = vld [vmem:[%s323 + $0x68] sm:$0xf]
        %v411 = vld [vmem:[%s323 + $0x6c] sm:$0xf]
        %v412 = vld [vmem:[%s323 + $0x70] sm:$0xf]
        %v413 = vld [vmem:[%s323 + $0x74] sm:$0xf]
        %v414 = vld [vmem:[%s323 + $0x78] sm:$0xf]
        %v415 = vld [vmem:[%s323 + $0x7c] sm:$0xf]
        %v416 = vld [vmem:[%s323 + $0x80] sm:$0xf]
        %v417 = vld [vmem:[%s323 + $0x84] sm:$0xf]
        %v418 = vld [vmem:[%s323 + $0x88] sm:$0xf]
        %v419 = vld [vmem:[%s323 + $0x8c] sm:$0xf]
        %v420 = vld [vmem:[%s323 + $0x90] sm:$0xf]
        %v421 = vld [vmem:[%s323 + $0x94] sm:$0xf]
        %v422 = vld [vmem:[%s323 + $0x98] sm:$0xf]
        %v423 = vld [vmem:[%s323 + $0x9c] sm:$0xf]
        %v424 = vld [vmem:[%s323 + $0xa0] sm:$0xf]
        %v425 = vld [vmem:[%s323 + $0xa4] sm:$0xf]
        %v426 = vld [vmem:[%s323 + $0xa8] sm:$0xf]
        %v427 = vld [vmem:[%s323 + $0xac] sm:$0xf]
        %v428 = vld [vmem:[%s323 + $0xb0] sm:$0xf]
        %v429 = vld [vmem:[%s323 + $0xb4] sm:$0xf]
        %v430 = vld [vmem:[%s323 + $0xb8] sm:$0xf]
        %v431 = vld [vmem:[%s323 + $0xbc] sm:$0xf]
        %v432 = vld [vmem:[%s323 + $0xc0] sm:$0xf]
        %v433 = vld [vmem:[%s323 + $0xc4] sm:$0xf]
        %v434 = vld [vmem:[%s323 + $0xc8] sm:$0xf]
        %v435 = vld [vmem:[%s323 + $0xcc] sm:$0xf]
        %v436 = vld [vmem:[%s323 + $0xd0] sm:$0xf]
        %v437 = vld [vmem:[%s323 + $0xd4] sm:$0xf]
        %v438 = vld [vmem:[%s323 + $0xd8] sm:$0xf]
        %v439 = vld [vmem:[%s323 + $0xdc] sm:$0xf]
        %v440 = vld [vmem:[%s323 + $0xe0] sm:$0xf]
        %v441 = vld [vmem:[%s323 + $0xe4] sm:$0xf]
        %v442 = vld [vmem:[%s323 + $0xe8] sm:$0xf]
        %v443 = vld [vmem:[%s323 + $0xec] sm:$0xf]
        %v444 = vld [vmem:[%s323 + $0xf0] sm:$0xf]
        %v445 = vld [vmem:[%s323 + $0xf4] sm:$0xf]
        %v446 = vld [vmem:[%s323 + $0xf8] sm:$0xf]
        %v447 = vld [vmem:[%s323 + $0xfc] sm:$0xf]
        %v448 = vld [vmem:[#allocation7] sm:$0xf]
        %v449 = vld [vmem:[#allocation7 + $0x4] sm:$0xf]
        %v450 = vld [vmem:[#allocation7 + $0x8] sm:$0xf]
        %v451 = vld [vmem:[#allocation7 + $0xc] sm:$0xf]
        %v452 = vld [vmem:[#allocation7 + $0x10] sm:$0xf]
        %v453 = vld [vmem:[#allocation7 + $0x14] sm:$0xf]
        %v454 = vld [vmem:[#allocation7 + $0x18] sm:$0xf]
        %v455 = vld [vmem:[#allocation7 + $0x1c] sm:$0xf]
        %v456 = vld [vmem:[#allocation7 + $0x20] sm:$0xf]
        %v457 = vld [vmem:[#allocation7 + $0x24] sm:$0xf]
        %v458 = vld [vmem:[#allocation7 + $0x28] sm:$0xf]
        %v459 = vld [vmem:[#allocation7 + $0x2c] sm:$0xf]
        %v460 = vld [vmem:[#allocation7 + $0x30] sm:$0xf]
        %v461 = vld [vmem:[#allocation7 + $0x34] sm:$0xf]
        %v462 = vld [vmem:[#allocation7 + $0x38] sm:$0xf]
        %v463 = vld [vmem:[#allocation7 + $0x3c] sm:$0xf]
        %v464 = vld [vmem:[%s3] sm:$0x1]
        %v466 = vlaneseq
        %v467 = vshrl.u32 %v466, 7
        %v468 = vsub.s32 0, %v467
        %v469 = vrot.slane %v464, %v468
        %v535 = vunpack.c.l.b16 %v384
        %v536 = vunpack.c.l.b16 %v385
        %v537 = vunpack.c.l.b16 %v386
        %v538 = vunpack.c.l.b16 %v387
        %v539 = vunpack.c.l.b16 %v388
        %v540 = vunpack.c.l.b16 %v389
        %v541 = vunpack.c.l.b16 %v390
        %v542 = vunpack.c.l.b16 %v391
        %v543 = vunpack.c.l.b16 %v392
        %v544 = vunpack.c.l.b16 %v393
        %v545 = vunpack.c.l.b16 %v394
        %v546 = vunpack.c.l.b16 %v395
        %v547 = vunpack.c.l.b16 %v396
        %v548 = vunpack.c.l.b16 %v397
        %v549 = vunpack.c.l.b16 %v398
        %v550 = vunpack.c.l.b16 %v399
        %v551 = vunpack.c.l.b16 %v400
        %v552 = vunpack.c.l.b16 %v401
        %v553 = vunpack.c.l.b16 %v402
        %v554 = vunpack.c.l.b16 %v403
        %v555 = vunpack.c.l.b16 %v404
        %v556 = vunpack.c.l.b16 %v405
        %v557 = vunpack.c.l.b16 %v406
        %v558 = vunpack.c.l.b16 %v407
        %v559 = vunpack.c.l.b16 %v408
        %v560 = vunpack.c.l.b16 %v409
        %v561 = vunpack.c.l.b16 %v410
        %v562 = vunpack.c.l.b16 %v411
        %v563 = vunpack.c.l.b16 %v412
        %v564 = vunpack.c.l.b16 %v413
        %v565 = vunpack.c.l.b16 %v414
        %v566 = vunpack.c.l.b16 %v415
        %v567 = vunpack.c.l.b16 %v416
        %v568 = vunpack.c.l.b16 %v417
        %v569 = vunpack.c.l.b16 %v418
        %v570 = vunpack.c.l.b16 %v419
        %v571 = vunpack.c.l.b16 %v420
        %v572 = vunpack.c.l.b16 %v421
        %v573 = vunpack.c.l.b16 %v422
        %v574 = vunpack.c.l.b16 %v423
        %v575 = vunpack.c.l.b16 %v424
        %v576 = vunpack.c.l.b16 %v425
        %v577 = vunpack.c.l.b16 %v426
        %v578 = vunpack.c.l.b16 %v427
        %v579 = vunpack.c.l.b16 %v428
        %v580 = vunpack.c.l.b16 %v429
        %v581 = vunpack.c.l.b16 %v430
        %v582 = vunpack.c.l.b16 %v431
        %v583 = vunpack.c.l.b16 %v432
        %v584 = vunpack.c.l.b16 %v433
        %v585 = vunpack.c.l.b16 %v434
        %v586 = vunpack.c.l.b16 %v435
        %v587 = vunpack.c.l.b16 %v436
        %v588 = vunpack.c.l.b16 %v437
        %v589 = vunpack.c.l.b16 %v438
        %v590 = vunpack.c.l.b16 %v439
        %v591 = vunpack.c.l.b16 %v440
        %v592 = vunpack.c.l.b16 %v441
        %v593 = vunpack.c.l.b16 %v442
        %v594 = vunpack.c.l.b16 %v443
        %v595 = vunpack.c.l.b16 %v444
        %v596 = vunpack.c.l.b16 %v445
        %v597 = vunpack.c.l.b16 %v446
        %v598 = vunpack.c.l.b16 %v447
        %v599 = vpack.c.b16 %v536, %v535
        %v600 = vpack.c.b16 %v538, %v537
        %v601 = vpack.c.b16 %v540, %v539
        %v602 = vpack.c.b16 %v542, %v541
        %v603 = vpack.c.b16 %v544, %v543
        %v604 = vpack.c.b16 %v546, %v545
        %v605 = vpack.c.b16 %v548, %v547
        %v606 = vpack.c.b16 %v550, %v549
        %v607 = vpack.c.b16 %v552, %v551
        %v608 = vpack.c.b16 %v554, %v553
        %v609 = vpack.c.b16 %v556, %v555
        %v610 = vpack.c.b16 %v558, %v557
        %v611 = vpack.c.b16 %v560, %v559
        %v612 = vpack.c.b16 %v562, %v561
        %v613 = vpack.c.b16 %v564, %v563
        %v614 = vpack.c.b16 %v566, %v565
        %v615 = vpack.c.b16 %v568, %v567
        %v616 = vpack.c.b16 %v570, %v569
        %v617 = vpack.c.b16 %v572, %v571
        %v618 = vpack.c.b16 %v574, %v573
        %v619 = vpack.c.b16 %v576, %v575
        %v620 = vpack.c.b16 %v578, %v577
        %v621 = vpack.c.b16 %v580, %v579
        %v622 = vpack.c.b16 %v582, %v581
        %v623 = vpack.c.b16 %v584, %v583
        %v624 = vpack.c.b16 %v586, %v585
        %v625 = vpack.c.b16 %v588, %v587
        %v626 = vpack.c.b16 %v590, %v589
        %v627 = vpack.c.b16 %v592, %v591
        %v628 = vpack.c.b16 %v594, %v593
        %v629 = vpack.c.b16 %v596, %v595
        %v630 = vpack.c.b16 %v598, %v597
        %v679 = vunpack.c.l.b16 %v448
        %v680 = vunpack.c.l.b16 %v449
        %v681 = vunpack.c.l.b16 %v450
        %v682 = vunpack.c.l.b16 %v451
        %v683 = vunpack.c.l.b16 %v452
        %v684 = vunpack.c.l.b16 %v453
        %v685 = vunpack.c.l.b16 %v454
        %v686 = vunpack.c.l.b16 %v455
        %v687 = vunpack.c.l.b16 %v456
        %v688 = vunpack.c.l.b16 %v457
        %v689 = vunpack.c.l.b16 %v458
        %v690 = vunpack.c.l.b16 %v459
        %v691 = vunpack.c.l.b16 %v460
        %v692 = vunpack.c.l.b16 %v461
        %v693 = vunpack.c.l.b16 %v462
        %v694 = vunpack.c.l.b16 %v463
        %v695 = vpack.c.b16 %v680, %v679
        %v696 = vpack.c.b16 %v682, %v681
        %v697 = vpack.c.b16 %v684, %v683
        %v698 = vpack.c.b16 %v686, %v685
        %v699 = vpack.c.b16 %v688, %v687
        %v700 = vpack.c.b16 %v690, %v689
        %v701 = vpack.c.b16 %v692, %v691
        %v702 = vpack.c.b16 %v694, %v693
        %711 = vmatprep.subr.bf16.mxu0 0
        %712 = vmatpush1.bf16.msra.mxu0 %v702
        %713 = vmatprep.subr.bf16.mxu0 0
        %714 = vmatpush1.bf16.msra.mxu0 %v701
        %715 = vmatprep.subr.bf16.mxu0 0
        %716 = vmatpush1.bf16.msra.mxu0 %v700
        %717 = vmatprep.subr.bf16.mxu0 0
        %718 = vmatpush1.bf16.msra.mxu0 %v699
        %719 = vmatprep.subr.bf16.mxu0 0
        %720 = vmatpush1.bf16.msra.mxu0 %v698
        %721 = vmatprep.subr.bf16.mxu0 0
        %722 = vmatpush1.bf16.msra.mxu0 %v697
        %723 = vmatprep.subr.bf16.mxu0 0
        %724 = vmatpush1.bf16.msra.mxu0 %v696
        %725 = vmatprep.subr.bf16.mxu0 0
        %726 = vmatpush1.bf16.msra.mxu0 %v695
        %727 = vmatprep.subr.bf16.mxu0 0
        %728 = vmatpush2.bf16.msra.mxu0 0
        %729 = vmatprep.subr.bf16.mxu0 0
        %730 = vmatpush2.bf16.msra.mxu0 0
        %731 = vmatprep.subr.bf16.mxu0 0
        %732 = vmatpush2.bf16.msra.mxu0 0
        %733 = vmatprep.subr.bf16.mxu0 0
        %734 = vmatpush2.bf16.msra.mxu0 0
        %735 = vmatprep.subr.bf16.mxu0 0
        %736 = vmatpush2.bf16.msra.mxu0 0
        %737 = vmatprep.subr.bf16.mxu0 0
        %738 = vmatpush2.bf16.msra.mxu0 0
        %739 = vmatprep.subr.bf16.mxu0 0
        %740 = vmatpush2.bf16.msra.mxu0 0
        %741 = vmatprep.subr.bf16.mxu0 0
        %742 = vmatpush2.bf16.msra.mxu0 0
        %743 = vmatprep.mubr.bf16.mxu0 0
        %744 = vmatmul.mubr.bf16.gmra.mxu0 %v599
        %v745 = vpop.f32.mrf.mxu0
        %v746 = vadd.f32 %v469, %v745
        %v747 = vpop.f32.mrf.mxu0
        %v748 = vpop.f32.mrf.mxu0
        %v749 = vadd.f32 %v469, %v748
        %v750 = vpop.f32.mrf.mxu0
        %751 = vmatprep.mubr.bf16.mxu0 0
        %752 = vmatmul.mubr.bf16.gmra.mxu0 %v600
        %v753 = vpop.f32.mrf.mxu0
        %v754 = vadd.f32 %v469, %v753
        %v755 = vpop.f32.mrf.mxu0
        %v756 = vpop.f32.mrf.mxu0
        %v757 = vadd.f32 %v469, %v756
        %v758 = vpop.f32.mrf.mxu0
        %759 = vmatprep.mubr.bf16.mxu0 0
        %760 = vmatmul.mubr.bf16.gmra.mxu0 %v601
        %v761 = vpop.f32.mrf.mxu0
        %v762 = vadd.f32 %v469, %v761
        %v763 = vpop.f32.mrf.mxu0
        %v764 = vpop.f32.mrf.mxu0
        %v765 = vadd.f32 %v469, %v764
        %v766 = vpop.f32.mrf.mxu0
        %767 = vmatprep.mubr.bf16.mxu0 0
        %768 = vmatmul.mubr.bf16.gmra.mxu0 %v602
        %v769 = vpop.f32.mrf.mxu0
        %v770 = vadd.f32 %v469, %v769
        %v771 = vpop.f32.mrf.mxu0
        %v772 = vpop.f32.mrf.mxu0
        %v773 = vadd.f32 %v469, %v772
        %v774 = vpop.f32.mrf.mxu0
        %775 = vmatprep.mubr.bf16.mxu0 0
        %776 = vmatmul.mubr.bf16.gmra.mxu0 %v603
        %v777 = vpop.f32.mrf.mxu0
        %v778 = vadd.f32 %v469, %v777
        %v779 = vpop.f32.mrf.mxu0
        %v780 = vpop.f32.mrf.mxu0
        %v781 = vadd.f32 %v469, %v780
        %v782 = vpop.f32.mrf.mxu0
        %783 = vmatprep.mubr.bf16.mxu0 0
        %784 = vmatmul.mubr.bf16.gmra.mxu0 %v604
        %v785 = vpop.f32.mrf.mxu0
        %v786 = vadd.f32 %v469, %v785
        %v787 = vpop.f32.mrf.mxu0
        %v788 = vpop.f32.mrf.mxu0
        %v789 = vadd.f32 %v469, %v788
        %v790 = vpop.f32.mrf.mxu0
        %791 = vmatprep.mubr.bf16.mxu0 0
        %792 = vmatmul.mubr.bf16.gmra.mxu0 %v605
        %v793 = vpop.f32.mrf.mxu0
        %v794 = vadd.f32 %v469, %v793
        %v795 = vpop.f32.mrf.mxu0
        %v796 = vpop.f32.mrf.mxu0
        %v797 = vadd.f32 %v469, %v796
        %v798 = vpop.f32.mrf.mxu0
        %799 = vmatprep.mubr.bf16.mxu0 0
        %800 = vmatmul.mubr.bf16.gmra.mxu0 %v606
        %v801 = vpop.f32.mrf.mxu0
        %v802 = vadd.f32 %v469, %v801
        %v803 = vpop.f32.mrf.mxu0
        %v804 = vpop.f32.mrf.mxu0
        %v805 = vadd.f32 %v469, %v804
        %v806 = vpop.f32.mrf.mxu0
        %807 = vmatprep.mubr.bf16.mxu0 0
        %808 = vmatmul.mubr.bf16.gmra.mxu0 %v607
        %v809 = vpop.f32.mrf.mxu0
        %v810 = vadd.f32 %v469, %v809
        %v811 = vpop.f32.mrf.mxu0
        %v812 = vpop.f32.mrf.mxu0
        %v813 = vadd.f32 %v469, %v812
        %v814 = vpop.f32.mrf.mxu0
        %815 = vmatprep.mubr.bf16.mxu0 0
        %816 = vmatmul.mubr.bf16.gmra.mxu0 %v608
        %v817 = vpop.f32.mrf.mxu0
        %v818 = vadd.f32 %v469, %v817
        %v819 = vpop.f32.mrf.mxu0
        %v820 = vpop.f32.mrf.mxu0
        %v821 = vadd.f32 %v469, %v820
        %v822 = vpop.f32.mrf.mxu0
        %823 = vmatprep.mubr.bf16.mxu0 0
        %824 = vmatmul.mubr.bf16.gmra.mxu0 %v609
        %v825 = vpop.f32.mrf.mxu0
        %v826 = vadd.f32 %v469, %v825
        %v827 = vpop.f32.mrf.mxu0
        %v828 = vpop.f32.mrf.mxu0
        %v829 = vadd.f32 %v469, %v828
        %v830 = vpop.f32.mrf.mxu0
        %831 = vmatprep.mubr.bf16.mxu0 0
        %832 = vmatmul.mubr.bf16.gmra.mxu0 %v610
        %v833 = vpop.f32.mrf.mxu0
        %v834 = vadd.f32 %v469, %v833
        %v835 = vpop.f32.mrf.mxu0
        %v836 = vpop.f32.mrf.mxu0
        %v837 = vadd.f32 %v469, %v836
        %v838 = vpop.f32.mrf.mxu0
        %839 = vmatprep.mubr.bf16.mxu0 0
        %840 = vmatmul.mubr.bf16.gmra.mxu0 %v611
        %v841 = vpop.f32.mrf.mxu0
        %v842 = vadd.f32 %v469, %v841
        %v843 = vpop.f32.mrf.mxu0
        %v844 = vpop.f32.mrf.mxu0
        %v845 = vadd.f32 %v469, %v844
        %v846 = vpop.f32.mrf.mxu0
        %847 = vmatprep.mubr.bf16.mxu0 0
        %848 = vmatmul.mubr.bf16.gmra.mxu0 %v612
        %v849 = vpop.f32.mrf.mxu0
        %v850 = vadd.f32 %v469, %v849
        %v851 = vpop.f32.mrf.mxu0
        %v852 = vpop.f32.mrf.mxu0
        %v853 = vadd.f32 %v469, %v852
        %v854 = vpop.f32.mrf.mxu0
        %855 = vmatprep.mubr.bf16.mxu0 0
        %856 = vmatmul.mubr.bf16.gmra.mxu0 %v613
        %v857 = vpop.f32.mrf.mxu0
        %v858 = vadd.f32 %v469, %v857
        %v859 = vpop.f32.mrf.mxu0
        %v860 = vpop.f32.mrf.mxu0
        %v861 = vadd.f32 %v469, %v860
        %v862 = vpop.f32.mrf.mxu0
        %863 = vmatprep.mubr.bf16.mxu0 0
        %864 = vmatmul.mubr.bf16.gmra.mxu0 %v614
        %v865 = vpop.f32.mrf.mxu0
        %v866 = vadd.f32 %v469, %v865
        %v867 = vpop.f32.mrf.mxu0
        %v868 = vpop.f32.mrf.mxu0
        %v869 = vadd.f32 %v469, %v868
        %v870 = vpop.f32.mrf.mxu0
        %871 = vmatprep.mubr.bf16.mxu0 0
        %872 = vmatmul.mubr.bf16.gmra.mxu0 %v615
        %v873 = vpop.f32.mrf.mxu0
        %v874 = vadd.f32 %v469, %v873
        %v875 = vpop.f32.mrf.mxu0
        %v876 = vpop.f32.mrf.mxu0
        %v877 = vadd.f32 %v469, %v876
        %v878 = vpop.f32.mrf.mxu0
        %879 = vmatprep.mubr.bf16.mxu0 0
        %880 = vmatmul.mubr.bf16.gmra.mxu0 %v616
        %v881 = vpop.f32.mrf.mxu0
        %v882 = vadd.f32 %v469, %v881
        %v883 = vpop.f32.mrf.mxu0
        %v884 = vpop.f32.mrf.mxu0
        %v885 = vadd.f32 %v469, %v884
        %v886 = vpop.f32.mrf.mxu0
        %887 = vmatprep.mubr.bf16.mxu0 0
        %888 = vmatmul.mubr.bf16.gmra.mxu0 %v617
        %v889 = vpop.f32.mrf.mxu0
        %v890 = vadd.f32 %v469, %v889
        %v891 = vpop.f32.mrf.mxu0
        %v892 = vpop.f32.mrf.mxu0
        %v893 = vadd.f32 %v469, %v892
        %v894 = vpop.f32.mrf.mxu0
        %895 = vmatprep.mubr.bf16.mxu0 0
        %896 = vmatmul.mubr.bf16.gmra.mxu0 %v618
        %v897 = vpop.f32.mrf.mxu0
        %v898 = vadd.f32 %v469, %v897
        %v899 = vpop.f32.mrf.mxu0
        %v900 = vpop.f32.mrf.mxu0
        %v901 = vadd.f32 %v469, %v900
        %v902 = vpop.f32.mrf.mxu0
        %903 = vmatprep.mubr.bf16.mxu0 0
        %904 = vmatmul.mubr.bf16.gmra.mxu0 %v619
        %v905 = vpop.f32.mrf.mxu0
        %v906 = vadd.f32 %v469, %v905
        %v907 = vpop.f32.mrf.mxu0
        %v908 = vpop.f32.mrf.mxu0
        %v909 = vadd.f32 %v469, %v908
        %v910 = vpop.f32.mrf.mxu0
        %911 = vmatprep.mubr.bf16.mxu0 0
        %912 = vmatmul.mubr.bf16.gmra.mxu0 %v620
        %v913 = vpop.f32.mrf.mxu0
        %v914 = vadd.f32 %v469, %v913
        %v915 = vpop.f32.mrf.mxu0
        %v916 = vpop.f32.mrf.mxu0
        %v917 = vadd.f32 %v469, %v916
        %v918 = vpop.f32.mrf.mxu0
        %919 = vmatprep.mubr.bf16.mxu0 0
        %920 = vmatmul.mubr.bf16.gmra.mxu0 %v621
        %v921 = vpop.f32.mrf.mxu0
        %v922 = vadd.f32 %v469, %v921
        %v923 = vpop.f32.mrf.mxu0
        %v924 = vpop.f32.mrf.mxu0
        %v925 = vadd.f32 %v469, %v924
        %v926 = vpop.f32.mrf.mxu0
        %927 = vmatprep.mubr.bf16.mxu0 0
        %928 = vmatmul.mubr.bf16.gmra.mxu0 %v622
        %v929 = vpop.f32.mrf.mxu0
        %v930 = vadd.f32 %v469, %v929
        %v931 = vpop.f32.mrf.mxu0
        %v932 = vpop.f32.mrf.mxu0
        %v933 = vadd.f32 %v469, %v932
        %v934 = vpop.f32.mrf.mxu0
        %935 = vmatprep.mubr.bf16.mxu0 0
        %936 = vmatmul.mubr.bf16.gmra.mxu0 %v623
        %v937 = vpop.f32.mrf.mxu0
        %v938 = vadd.f32 %v469, %v937
        %v939 = vpop.f32.mrf.mxu0
        %v940 = vpop.f32.mrf.mxu0
        %v941 = vadd.f32 %v469, %v940
        %v942 = vpop.f32.mrf.mxu0
        %943 = vmatprep.mubr.bf16.mxu0 0
        %944 = vmatmul.mubr.bf16.gmra.mxu0 %v624
        %v945 = vpop.f32.mrf.mxu0
        %v946 = vadd.f32 %v469, %v945
        %v947 = vpop.f32.mrf.mxu0
        %v948 = vpop.f32.mrf.mxu0
        %v949 = vadd.f32 %v469, %v948
        %v950 = vpop.f32.mrf.mxu0
        %951 = vmatprep.mubr.bf16.mxu0 0
        %952 = vmatmul.mubr.bf16.gmra.mxu0 %v625
        %v953 = vpop.f32.mrf.mxu0
        %v954 = vadd.f32 %v469, %v953
        %v955 = vpop.f32.mrf.mxu0
        %v956 = vpop.f32.mrf.mxu0
        %v957 = vadd.f32 %v469, %v956
        %v958 = vpop.f32.mrf.mxu0
        %959 = vmatprep.mubr.bf16.mxu0 0
        %960 = vmatmul.mubr.bf16.gmra.mxu0 %v626
        %v961 = vpop.f32.mrf.mxu0
        %v962 = vadd.f32 %v469, %v961
        %v963 = vpop.f32.mrf.mxu0
        %v964 = vpop.f32.mrf.mxu0
        %v965 = vadd.f32 %v469, %v964
        %v966 = vpop.f32.mrf.mxu0
        %967 = vmatprep.mubr.bf16.mxu0 0
        %968 = vmatmul.mubr.bf16.gmra.mxu0 %v627
        %v969 = vpop.f32.mrf.mxu0
        %v970 = vadd.f32 %v469, %v969
        %v971 = vpop.f32.mrf.mxu0
        %v972 = vpop.f32.mrf.mxu0
        %v973 = vadd.f32 %v469, %v972
        %v974 = vpop.f32.mrf.mxu0
        %975 = vmatprep.mubr.bf16.mxu0 0
        %976 = vmatmul.mubr.bf16.gmra.mxu0 %v628
        %v977 = vpop.f32.mrf.mxu0
        %v978 = vadd.f32 %v469, %v977
        %v979 = vpop.f32.mrf.mxu0
        %v980 = vpop.f32.mrf.mxu0
        %v981 = vadd.f32 %v469, %v980
        %v982 = vpop.f32.mrf.mxu0
        %983 = vmatprep.mubr.bf16.mxu0 0
        %984 = vmatmul.mubr.bf16.gmra.mxu0 %v629
        %v985 = vpop.f32.mrf.mxu0
        %v986 = vadd.f32 %v469, %v985
        %v987 = vpop.f32.mrf.mxu0
        %v988 = vpop.f32.mrf.mxu0
        %v989 = vadd.f32 %v469, %v988
        %v990 = vpop.f32.mrf.mxu0
        %991 = vmatprep.mubr.bf16.mxu0 0
        %992 = vmatmul.mubr.bf16.gmra.mxu0 %v630
        %v993 = vpop.f32.mrf.mxu0
        %v994 = vadd.f32 %v469, %v993
        %v995 = vpop.f32.mrf.mxu0
        %v996 = vpop.f32.mrf.mxu0
        %v997 = vadd.f32 %v469, %v996
        %v998 = vpop.f32.mrf.mxu0
        %999 = vdwg.mxu0
        %v1000 = vmax.f32 %v746, 0.0
        %v1001 = vmax.f32 %v749, 0.0
        %v1002 = vmax.f32 %v754, 0.0
        %v1003 = vmax.f32 %v757, 0.0
        %v1004 = vmax.f32 %v762, 0.0
        %v1005 = vmax.f32 %v765, 0.0
        %v1006 = vmax.f32 %v770, 0.0
        %v1007 = vmax.f32 %v773, 0.0
        %v1008 = vmax.f32 %v778, 0.0
        %v1009 = vmax.f32 %v781, 0.0
        %v1010 = vmax.f32 %v786, 0.0
        %v1011 = vmax.f32 %v789, 0.0
        %v1012 = vmax.f32 %v794, 0.0
        %v1013 = vmax.f32 %v797, 0.0
        %v1014 = vmax.f32 %v802, 0.0
        %v1015 = vmax.f32 %v805, 0.0
        %v1016 = vmax.f32 %v810, 0.0
        %v1017 = vmax.f32 %v813, 0.0
        %v1018 = vmax.f32 %v818, 0.0
        %v1019 = vmax.f32 %v821, 0.0
        %v1020 = vmax.f32 %v826, 0.0
        %v1021 = vmax.f32 %v829, 0.0
        %v1022 = vmax.f32 %v834, 0.0
        %v1023 = vmax.f32 %v837, 0.0
        %v1024 = vmax.f32 %v842, 0.0
        %v1025 = vmax.f32 %v845, 0.0
        %v1026 = vmax.f32 %v850, 0.0
        %v1027 = vmax.f32 %v853, 0.0
        %v1028 = vmax.f32 %v858, 0.0
        %v1029 = vmax.f32 %v861, 0.0
        %v1030 = vmax.f32 %v866, 0.0
        %v1031 = vmax.f32 %v869, 0.0
        %v1032 = vmax.f32 %v874, 0.0
        %v1033 = vmax.f32 %v877, 0.0
        %v1034 = vmax.f32 %v882, 0.0
        %v1035 = vmax.f32 %v885, 0.0
        %v1036 = vmax.f32 %v890, 0.0
        %v1037 = vmax.f32 %v893, 0.0
        %v1038 = vmax.f32 %v898, 0.0
        %v1039 = vmax.f32 %v901, 0.0
        %v1040 = vmax.f32 %v906, 0.0
        %v1041 = vmax.f32 %v909, 0.0
        %v1042 = vmax.f32 %v914, 0.0
        %v1043 = vmax.f32 %v917, 0.0
        %v1044 = vmax.f32 %v922, 0.0
        %v1045 = vmax.f32 %v925, 0.0
        %v1046 = vmax.f32 %v930, 0.0
        %v1047 = vmax.f32 %v933, 0.0
        %v1048 = vmax.f32 %v938, 0.0
        %v1049 = vmax.f32 %v941, 0.0
        %v1050 = vmax.f32 %v946, 0.0
        %v1051 = vmax.f32 %v949, 0.0
        %v1052 = vmax.f32 %v954, 0.0
        %v1053 = vmax.f32 %v957, 0.0
        %v1054 = vmax.f32 %v962, 0.0
        %v1055 = vmax.f32 %v965, 0.0
        %v1056 = vmax.f32 %v970, 0.0
        %v1057 = vmax.f32 %v973, 0.0
        %v1058 = vmax.f32 %v978, 0.0
        %v1059 = vmax.f32 %v981, 0.0
        %v1060 = vmax.f32 %v986, 0.0
        %v1061 = vmax.f32 %v989, 0.0
        %v1062 = vmax.f32 %v994, 0.0
        %v1063 = vmax.f32 %v997, 0.0
        %v1064 = vpack.c.bf16 %v1001, %v1000
        %v1065 = vpack.c.bf16 %v1003, %v1002
        %v1066 = vpack.c.bf16 %v1005, %v1004
        %v1067 = vpack.c.bf16 %v1007, %v1006
        %v1068 = vpack.c.bf16 %v1009, %v1008
        %v1069 = vpack.c.bf16 %v1011, %v1010
        %v1070 = vpack.c.bf16 %v1013, %v1012
        %v1071 = vpack.c.bf16 %v1015, %v1014
        %v1072 = vpack.c.bf16 %v1017, %v1016
        %v1073 = vpack.c.bf16 %v1019, %v1018
        %v1074 = vpack.c.bf16 %v1021, %v1020
        %v1075 = vpack.c.bf16 %v1023, %v1022
        %v1076 = vpack.c.bf16 %v1025, %v1024
        %v1077 = vpack.c.bf16 %v1027, %v1026
        %v1078 = vpack.c.bf16 %v1029, %v1028
        %v1079 = vpack.c.bf16 %v1031, %v1030
        %v1080 = vpack.c.bf16 %v1033, %v1032
        %v1081 = vpack.c.bf16 %v1035, %v1034
        %v1082 = vpack.c.bf16 %v1037, %v1036
        %v1083 = vpack.c.bf16 %v1039, %v1038
        %v1084 = vpack.c.bf16 %v1041, %v1040
        %v1085 = vpack.c.bf16 %v1043, %v1042
        %v1086 = vpack.c.bf16 %v1045, %v1044
        %v1087 = vpack.c.bf16 %v1047, %v1046
        %v1088 = vpack.c.bf16 %v1049, %v1048
        %v1089 = vpack.c.bf16 %v1051, %v1050
        %v1090 = vpack.c.bf16 %v1053, %v1052
        %v1091 = vpack.c.bf16 %v1055, %v1054
        %v1092 = vpack.c.bf16 %v1057, %v1056
        %v1093 = vpack.c.bf16 %v1059, %v1058
        %v1094 = vpack.c.bf16 %v1061, %v1060
        %v1095 = vpack.c.bf16 %v1063, %v1062
        %v1096 = vld [vmem:[#allocation8] sm:$0xf]
        %v1097 = vld [vmem:[#allocation8 + $0x4] sm:$0xf]
        %v1098 = vld [vmem:[#allocation8 + $0x8] sm:$0xf]
        %v1099 = vld [vmem:[#allocation8 + $0xc] sm:$0xf]
        %v1100 = vld [vmem:[#allocation8 + $0x10] sm:$0xf]
        %v1101 = vld [vmem:[#allocation8 + $0x14] sm:$0xf]
        %v1102 = vld [vmem:[#allocation8 + $0x18] sm:$0xf]
        %v1103 = vld [vmem:[#allocation8 + $0x1c] sm:$0xf]
        %v1104 = vld [vmem:[#allocation8 + $0x20] sm:$0xf]
        %v1105 = vld [vmem:[#allocation8 + $0x24] sm:$0xf]
        %v1106 = vld [vmem:[#allocation8 + $0x28] sm:$0xf]
        %v1107 = vld [vmem:[#allocation8 + $0x2c] sm:$0xf]
        %v1108 = vld [vmem:[#allocation8 + $0x30] sm:$0xf]
        %v1109 = vld [vmem:[#allocation8 + $0x34] sm:$0xf]
        %v1110 = vld [vmem:[#allocation8 + $0x38] sm:$0xf]
        %v1111 = vld [vmem:[#allocation8 + $0x3c] sm:$0xf]
        %v1112 = vld [vmem:[%s332] sm:$0xf]
        %v1113 = vld [vmem:[%s332 + $0x4] sm:$0xf]
        %v1114 = vld [vmem:[%s332 + $0x8] sm:$0xf]
        %v1115 = vld [vmem:[%s332 + $0xc] sm:$0xf]
        %v1116 = vld [vmem:[%s332 + $0x10] sm:$0xf]
        %v1117 = vld [vmem:[%s332 + $0x14] sm:$0xf]
        %v1118 = vld [vmem:[%s332 + $0x18] sm:$0xf]
        %v1119 = vld [vmem:[%s332 + $0x1c] sm:$0xf]
        %v1120 = vld [vmem:[%s332 + $0x20] sm:$0xf]
        %v1121 = vld [vmem:[%s332 + $0x24] sm:$0xf]
        %v1122 = vld [vmem:[%s332 + $0x28] sm:$0xf]
        %v1123 = vld [vmem:[%s332 + $0x2c] sm:$0xf]
        %v1124 = vld [vmem:[%s332 + $0x30] sm:$0xf]
        %v1125 = vld [vmem:[%s332 + $0x34] sm:$0xf]
        %v1126 = vld [vmem:[%s332 + $0x38] sm:$0xf]
        %v1127 = vld [vmem:[%s332 + $0x3c] sm:$0xf]
        %v1128 = vld [vmem:[%s332 + $0x40] sm:$0xf]
        %v1129 = vld [vmem:[%s332 + $0x44] sm:$0xf]
        %v1130 = vld [vmem:[%s332 + $0x48] sm:$0xf]
        %v1131 = vld [vmem:[%s332 + $0x4c] sm:$0xf]
        %v1132 = vld [vmem:[%s332 + $0x50] sm:$0xf]
        %v1133 = vld [vmem:[%s332 + $0x54] sm:$0xf]
        %v1134 = vld [vmem:[%s332 + $0x58] sm:$0xf]
        %v1135 = vld [vmem:[%s332 + $0x5c] sm:$0xf]
        %v1136 = vld [vmem:[%s332 + $0x60] sm:$0xf]
        %v1137 = vld [vmem:[%s332 + $0x64] sm:$0xf]
        %v1138 = vld [vmem:[%s332 + $0x68] sm:$0xf]
        %v1139 = vld [vmem:[%s332 + $0x6c] sm:$0xf]
        %v1140 = vld [vmem:[%s332 + $0x70] sm:$0xf]
        %v1141 = vld [vmem:[%s332 + $0x74] sm:$0xf]
        %v1142 = vld [vmem:[%s332 + $0x78] sm:$0xf]
        %v1143 = vld [vmem:[%s332 + $0x7c] sm:$0xf]
        %v1144 = vld [vmem:[%s332 + $0x80] sm:$0xf]
        %v1145 = vld [vmem:[%s332 + $0x84] sm:$0xf]
        %v1146 = vld [vmem:[%s332 + $0x88] sm:$0xf]
        %v1147 = vld [vmem:[%s332 + $0x8c] sm:$0xf]
        %v1148 = vld [vmem:[%s332 + $0x90] sm:$0xf]
        %v1149 = vld [vmem:[%s332 + $0x94] sm:$0xf]
        %v1150 = vld [vmem:[%s332 + $0x98] sm:$0xf]
        %v1151 = vld [vmem:[%s332 + $0x9c] sm:$0xf]
        %v1152 = vld [vmem:[%s332 + $0xa0] sm:$0xf]
        %v1153 = vld [vmem:[%s332 + $0xa4] sm:$0xf]
        %v1154 = vld [vmem:[%s332 + $0xa8] sm:$0xf]
        %v1155 = vld [vmem:[%s332 + $0xac] sm:$0xf]
        %v1156 = vld [vmem:[%s332 + $0xb0] sm:$0xf]
        %v1157 = vld [vmem:[%s332 + $0xb4] sm:$0xf]
        %v1158 = vld [vmem:[%s332 + $0xb8] sm:$0xf]
        %v1159 = vld [vmem:[%s332 + $0xbc] sm:$0xf]
        %v1160 = vld [vmem:[%s332 + $0xc0] sm:$0xf]
        %v1161 = vld [vmem:[%s332 + $0xc4] sm:$0xf]
        %v1162 = vld [vmem:[%s332 + $0xc8] sm:$0xf]
        %v1163 = vld [vmem:[%s332 + $0xcc] sm:$0xf]
        %v1164 = vld [vmem:[%s332 + $0xd0] sm:$0xf]
        %v1165 = vld [vmem:[%s332 + $0xd4] sm:$0xf]
        %v1166 = vld [vmem:[%s332 + $0xd8] sm:$0xf]
        %v1167 = vld [vmem:[%s332 + $0xdc] sm:$0xf]
        %v1168 = vld [vmem:[%s332 + $0xe0] sm:$0xf]
        %v1169 = vld [vmem:[%s332 + $0xe4] sm:$0xf]
        %v1170 = vld [vmem:[%s332 + $0xe8] sm:$0xf]
        %v1171 = vld [vmem:[%s332 + $0xec] sm:$0xf]
        %v1172 = vld [vmem:[%s332 + $0xf0] sm:$0xf]
        %v1173 = vld [vmem:[%s332 + $0xf4] sm:$0xf]
        %v1174 = vld [vmem:[%s332 + $0xf8] sm:$0xf]
        %v1175 = vld [vmem:[%s332 + $0xfc] sm:$0xf]
        %v1176 = vld [vmem:[#allocation10] sm:$0xf]
        %v1177 = vld [vmem:[#allocation10 + $0x4] sm:$0xf]
        %v1178 = vld [vmem:[#allocation10 + $0x8] sm:$0xf]
        %v1179 = vld [vmem:[#allocation10 + $0xc] sm:$0xf]
        %v1180 = vld [vmem:[#allocation10 + $0x10] sm:$0xf]
        %v1181 = vld [vmem:[#allocation10 + $0x14] sm:$0xf]
        %v1182 = vld [vmem:[#allocation10 + $0x18] sm:$0xf]
        %v1183 = vld [vmem:[#allocation10 + $0x1c] sm:$0xf]
        %v1184 = vld [vmem:[#allocation10 + $0x20] sm:$0xf]
        %v1185 = vld [vmem:[#allocation10 + $0x24] sm:$0xf]
        %v1186 = vld [vmem:[#allocation10 + $0x28] sm:$0xf]
        %v1187 = vld [vmem:[#allocation10 + $0x2c] sm:$0xf]
        %v1188 = vld [vmem:[#allocation10 + $0x30] sm:$0xf]
        %v1189 = vld [vmem:[#allocation10 + $0x34] sm:$0xf]
        %v1190 = vld [vmem:[#allocation10 + $0x38] sm:$0xf]
        %v1191 = vld [vmem:[#allocation10 + $0x3c] sm:$0xf]
        %v1256 = vunpack.c.l.b16 %v1112
        %v1257 = vunpack.c.l.b16 %v1113
        %v1258 = vunpack.c.l.b16 %v1114
        %v1259 = vunpack.c.l.b16 %v1115
        %v1260 = vunpack.c.l.b16 %v1116
        %v1261 = vunpack.c.l.b16 %v1117
        %v1262 = vunpack.c.l.b16 %v1118
        %v1263 = vunpack.c.l.b16 %v1119
        %v1264 = vunpack.c.l.b16 %v1120
        %v1265 = vunpack.c.l.b16 %v1121
        %v1266 = vunpack.c.l.b16 %v1122
        %v1267 = vunpack.c.l.b16 %v1123
        %v1268 = vunpack.c.l.b16 %v1124
        %v1269 = vunpack.c.l.b16 %v1125
        %v1270 = vunpack.c.l.b16 %v1126
        %v1271 = vunpack.c.l.b16 %v1127
        %v1272 = vunpack.c.l.b16 %v1128
        %v1273 = vunpack.c.l.b16 %v1129
        %v1274 = vunpack.c.l.b16 %v1130
        %v1275 = vunpack.c.l.b16 %v1131
        %v1276 = vunpack.c.l.b16 %v1132
        %v1277 = vunpack.c.l.b16 %v1133
        %v1278 = vunpack.c.l.b16 %v1134
        %v1279 = vunpack.c.l.b16 %v1135
        %v1280 = vunpack.c.l.b16 %v1136
        %v1281 = vunpack.c.l.b16 %v1137
        %v1282 = vunpack.c.l.b16 %v1138
        %v1283 = vunpack.c.l.b16 %v1139
        %v1284 = vunpack.c.l.b16 %v1140
        %v1285 = vunpack.c.l.b16 %v1141
        %v1286 = vunpack.c.l.b16 %v1142
        %v1287 = vunpack.c.l.b16 %v1143
        %v1288 = vunpack.c.l.b16 %v1144
        %v1289 = vunpack.c.l.b16 %v1145
        %v1290 = vunpack.c.l.b16 %v1146
        %v1291 = vunpack.c.l.b16 %v1147
        %v1292 = vunpack.c.l.b16 %v1148
        %v1293 = vunpack.c.l.b16 %v1149
        %v1294 = vunpack.c.l.b16 %v1150
        %v1295 = vunpack.c.l.b16 %v1151
        %v1296 = vunpack.c.l.b16 %v1152
        %v1297 = vunpack.c.l.b16 %v1153
        %v1298 = vunpack.c.l.b16 %v1154
        %v1299 = vunpack.c.l.b16 %v1155
        %v1300 = vunpack.c.l.b16 %v1156
        %v1301 = vunpack.c.l.b16 %v1157
        %v1302 = vunpack.c.l.b16 %v1158
        %v1303 = vunpack.c.l.b16 %v1159
        %v1304 = vunpack.c.l.b16 %v1160
        %v1305 = vunpack.c.l.b16 %v1161
        %v1306 = vunpack.c.l.b16 %v1162
        %v1307 = vunpack.c.l.b16 %v1163
        %v1308 = vunpack.c.l.b16 %v1164
        %v1309 = vunpack.c.l.b16 %v1165
        %v1310 = vunpack.c.l.b16 %v1166
        %v1311 = vunpack.c.l.b16 %v1167
        %v1312 = vunpack.c.l.b16 %v1168
        %v1313 = vunpack.c.l.b16 %v1169
        %v1314 = vunpack.c.l.b16 %v1170
        %v1315 = vunpack.c.l.b16 %v1171
        %v1316 = vunpack.c.l.b16 %v1172
        %v1317 = vunpack.c.l.b16 %v1173
        %v1318 = vunpack.c.l.b16 %v1174
        %v1319 = vunpack.c.l.b16 %v1175
        %v1320 = vpack.c.b16 %v1257, %v1256
        %v1321 = vpack.c.b16 %v1259, %v1258
        %v1322 = vpack.c.b16 %v1261, %v1260
        %v1323 = vpack.c.b16 %v1263, %v1262
        %v1324 = vpack.c.b16 %v1265, %v1264
        %v1325 = vpack.c.b16 %v1267, %v1266
        %v1326 = vpack.c.b16 %v1269, %v1268
        %v1327 = vpack.c.b16 %v1271, %v1270
        %v1328 = vpack.c.b16 %v1273, %v1272
        %v1329 = vpack.c.b16 %v1275, %v1274
        %v1330 = vpack.c.b16 %v1277, %v1276
        %v1331 = vpack.c.b16 %v1279, %v1278
        %v1332 = vpack.c.b16 %v1281, %v1280
        %v1333 = vpack.c.b16 %v1283, %v1282
        %v1334 = vpack.c.b16 %v1285, %v1284
        %v1335 = vpack.c.b16 %v1287, %v1286
        %v1336 = vpack.c.b16 %v1289, %v1288
        %v1337 = vpack.c.b16 %v1291, %v1290
        %v1338 = vpack.c.b16 %v1293, %v1292
        %v1339 = vpack.c.b16 %v1295, %v1294
        %v1340 = vpack.c.b16 %v1297, %v1296
        %v1341 = vpack.c.b16 %v1299, %v1298
        %v1342 = vpack.c.b16 %v1301, %v1300
        %v1343 = vpack.c.b16 %v1303, %v1302
        %v1344 = vpack.c.b16 %v1305, %v1304
        %v1345 = vpack.c.b16 %v1307, %v1306
        %v1346 = vpack.c.b16 %v1309, %v1308
        %v1347 = vpack.c.b16 %v1311, %v1310
        %v1348 = vpack.c.b16 %v1313, %v1312
        %v1349 = vpack.c.b16 %v1315, %v1314
        %v1350 = vpack.c.b16 %v1317, %v1316
        %v1351 = vpack.c.b16 %v1319, %v1318
        %v1400 = vunpack.c.l.b16 %v1176
        %v1401 = vunpack.c.l.b16 %v1177
        %v1402 = vunpack.c.l.b16 %v1178
        %v1403 = vunpack.c.l.b16 %v1179
        %v1404 = vunpack.c.l.b16 %v1180
        %v1405 = vunpack.c.l.b16 %v1181
        %v1406 = vunpack.c.l.b16 %v1182
        %v1407 = vunpack.c.l.b16 %v1183
        %v1408 = vunpack.c.l.b16 %v1184
        %v1409 = vunpack.c.l.b16 %v1185
        %v1410 = vunpack.c.l.b16 %v1186
        %v1411 = vunpack.c.l.b16 %v1187
        %v1412 = vunpack.c.l.b16 %v1188
        %v1413 = vunpack.c.l.b16 %v1189
        %v1414 = vunpack.c.l.b16 %v1190
        %v1415 = vunpack.c.l.b16 %v1191
        %v1416 = vpack.c.b16 %v1401, %v1400
        %v1417 = vpack.c.b16 %v1403, %v1402
        %v1418 = vpack.c.b16 %v1405, %v1404
        %v1419 = vpack.c.b16 %v1407, %v1406
        %v1420 = vpack.c.b16 %v1409, %v1408
        %v1421 = vpack.c.b16 %v1411, %v1410
        %v1422 = vpack.c.b16 %v1413, %v1412
        %v1423 = vpack.c.b16 %v1415, %v1414
        %1432 = vmatprep.subr.bf16.mxu0 0
        %1433 = vmatpush1.bf16.msra.mxu0 %v1423
        %1434 = vmatprep.subr.bf16.mxu0 0
        %1435 = vmatpush1.bf16.msra.mxu0 %v1422
        %1436 = vmatprep.subr.bf16.mxu0 0
        %1437 = vmatpush1.bf16.msra.mxu0 %v1421
        %1438 = vmatprep.subr.bf16.mxu0 0
        %1439 = vmatpush1.bf16.msra.mxu0 %v1420
        %1440 = vmatprep.subr.bf16.mxu0 0
        %1441 = vmatpush1.bf16.msra.mxu0 %v1419
        %1442 = vmatprep.subr.bf16.mxu0 0
        %1443 = vmatpush1.bf16.msra.mxu0 %v1418
        %1444 = vmatprep.subr.bf16.mxu0 0
        %1445 = vmatpush1.bf16.msra.mxu0 %v1417
        %1446 = vmatprep.subr.bf16.mxu0 0
        %1447 = vmatpush1.bf16.msra.mxu0 %v1416
        %1448 = vmatprep.subr.bf16.mxu0 0
        %1449 = vmatpush2.bf16.msra.mxu0 0
        %1450 = vmatprep.subr.bf16.mxu0 0
        %1451 = vmatpush2.bf16.msra.mxu0 0
        %1452 = vmatprep.subr.bf16.mxu0 0
        %1453 = vmatpush2.bf16.msra.mxu0 0
        %1454 = vmatprep.subr.bf16.mxu0 0
        %1455 = vmatpush2.bf16.msra.mxu0 0
        %1456 = vmatprep.subr.bf16.mxu0 0
        %1457 = vmatpush2.bf16.msra.mxu0 0
        %1458 = vmatprep.subr.bf16.mxu0 0
        %1459 = vmatpush2.bf16.msra.mxu0 0
        %1460 = vmatprep.subr.bf16.mxu0 0
        %1461 = vmatpush2.bf16.msra.mxu0 0
        %1462 = vmatprep.subr.bf16.mxu0 0
        %1463 = vmatpush2.bf16.msra.mxu0 0
        %1464 = vmatprep.mubr.bf16.mxu0 0
        %1465 = vmatmul.mubr.bf16.gmra.mxu0 %v1320
        %v1466 = vpop.f32.mrf.mxu0
        %v1467 = vadd.f32 0.0, %v1466
        %v1468 = vpop.f32.mrf.mxu0
        %v1469 = vpop.f32.mrf.mxu0
        %v1470 = vadd.f32 0.0, %v1469
        %v1471 = vpop.f32.mrf.mxu0
        %1472 = vmatprep.mubr.bf16.mxu0 0
        %1473 = vmatmul.mubr.bf16.gmra.mxu0 %v1321
        %v1474 = vpop.f32.mrf.mxu0
        %v1475 = vadd.f32 0.0, %v1474
        %v1476 = vpop.f32.mrf.mxu0
        %v1477 = vpop.f32.mrf.mxu0
        %v1478 = vadd.f32 0.0, %v1477
        %v1479 = vpop.f32.mrf.mxu0
        %1480 = vmatprep.mubr.bf16.mxu0 0
        %1481 = vmatmul.mubr.bf16.gmra.mxu0 %v1322
        %v1482 = vpop.f32.mrf.mxu0
        %v1483 = vadd.f32 0.0, %v1482
        %v1484 = vpop.f32.mrf.mxu0
        %v1485 = vpop.f32.mrf.mxu0
        %v1486 = vadd.f32 0.0, %v1485
        %v1487 = vpop.f32.mrf.mxu0
        %1488 = vmatprep.mubr.bf16.mxu0 0
        %1489 = vmatmul.mubr.bf16.gmra.mxu0 %v1323
        %v1490 = vpop.f32.mrf.mxu0
        %v1491 = vadd.f32 0.0, %v1490
        %v1492 = vpop.f32.mrf.mxu0
        %v1493 = vpop.f32.mrf.mxu0
        %v1494 = vadd.f32 0.0, %v1493
        %v1495 = vpop.f32.mrf.mxu0
        %1496 = vmatprep.mubr.bf16.mxu0 0
        %1497 = vmatmul.mubr.bf16.gmra.mxu0 %v1324
        %v1498 = vpop.f32.mrf.mxu0
        %v1499 = vadd.f32 0.0, %v1498
        %v1500 = vpop.f32.mrf.mxu0
        %v1501 = vpop.f32.mrf.mxu0
        %v1502 = vadd.f32 0.0, %v1501
        %v1503 = vpop.f32.mrf.mxu0
        %1504 = vmatprep.mubr.bf16.mxu0 0
        %1505 = vmatmul.mubr.bf16.gmra.mxu0 %v1325
        %v1506 = vpop.f32.mrf.mxu0
        %v1507 = vadd.f32 0.0, %v1506
        %v1508 = vpop.f32.mrf.mxu0
        %v1509 = vpop.f32.mrf.mxu0
        %v1510 = vadd.f32 0.0, %v1509
        %v1511 = vpop.f32.mrf.mxu0
        %1512 = vmatprep.mubr.bf16.mxu0 0
        %1513 = vmatmul.mubr.bf16.gmra.mxu0 %v1326
        %v1514 = vpop.f32.mrf.mxu0
        %v1515 = vadd.f32 0.0, %v1514
        %v1516 = vpop.f32.mrf.mxu0
        %v1517 = vpop.f32.mrf.mxu0
        %v1518 = vadd.f32 0.0, %v1517
        %v1519 = vpop.f32.mrf.mxu0
        %1520 = vmatprep.mubr.bf16.mxu0 0
        %1521 = vmatmul.mubr.bf16.gmra.mxu0 %v1327
        %v1522 = vpop.f32.mrf.mxu0
        %v1523 = vadd.f32 0.0, %v1522
        %v1524 = vpop.f32.mrf.mxu0
        %v1525 = vpop.f32.mrf.mxu0
        %v1526 = vadd.f32 0.0, %v1525
        %v1527 = vpop.f32.mrf.mxu0
        %1528 = vmatprep.mubr.bf16.mxu0 0
        %1529 = vmatmul.mubr.bf16.gmra.mxu0 %v1328
        %v1530 = vpop.f32.mrf.mxu0
        %v1531 = vadd.f32 0.0, %v1530
        %v1532 = vpop.f32.mrf.mxu0
        %v1533 = vpop.f32.mrf.mxu0
        %v1534 = vadd.f32 0.0, %v1533
        %v1535 = vpop.f32.mrf.mxu0
        %1536 = vmatprep.mubr.bf16.mxu0 0
        %1537 = vmatmul.mubr.bf16.gmra.mxu0 %v1329
        %v1538 = vpop.f32.mrf.mxu0
        %v1539 = vadd.f32 0.0, %v1538
        %v1540 = vpop.f32.mrf.mxu0
        %v1541 = vpop.f32.mrf.mxu0
        %v1542 = vadd.f32 0.0, %v1541
        %v1543 = vpop.f32.mrf.mxu0
        %1544 = vmatprep.mubr.bf16.mxu0 0
        %1545 = vmatmul.mubr.bf16.gmra.mxu0 %v1330
        %v1546 = vpop.f32.mrf.mxu0
        %v1547 = vadd.f32 0.0, %v1546
        %v1548 = vpop.f32.mrf.mxu0
        %v1549 = vpop.f32.mrf.mxu0
        %v1550 = vadd.f32 0.0, %v1549
        %v1551 = vpop.f32.mrf.mxu0
        %1552 = vmatprep.mubr.bf16.mxu0 0
        %1553 = vmatmul.mubr.bf16.gmra.mxu0 %v1331
        %v1554 = vpop.f32.mrf.mxu0
        %v1555 = vadd.f32 0.0, %v1554
        %v1556 = vpop.f32.mrf.mxu0
        %v1557 = vpop.f32.mrf.mxu0
        %v1558 = vadd.f32 0.0, %v1557
        %v1559 = vpop.f32.mrf.mxu0
        %1560 = vmatprep.mubr.bf16.mxu0 0
        %1561 = vmatmul.mubr.bf16.gmra.mxu0 %v1332
        %v1562 = vpop.f32.mrf.mxu0
        %v1563 = vadd.f32 0.0, %v1562
        %v1564 = vpop.f32.mrf.mxu0
        %v1565 = vpop.f32.mrf.mxu0
        %v1566 = vadd.f32 0.0, %v1565
        %v1567 = vpop.f32.mrf.mxu0
        %1568 = vmatprep.mubr.bf16.mxu0 0
        %1569 = vmatmul.mubr.bf16.gmra.mxu0 %v1333
        %v1570 = vpop.f32.mrf.mxu0
        %v1571 = vadd.f32 0.0, %v1570
        %v1572 = vpop.f32.mrf.mxu0
        %v1573 = vpop.f32.mrf.mxu0
        %v1574 = vadd.f32 0.0, %v1573
        %v1575 = vpop.f32.mrf.mxu0
        %1576 = vmatprep.mubr.bf16.mxu0 0
        %1577 = vmatmul.mubr.bf16.gmra.mxu0 %v1334
        %v1578 = vpop.f32.mrf.mxu0
        %v1579 = vadd.f32 0.0, %v1578
        %v1580 = vpop.f32.mrf.mxu0
        %v1581 = vpop.f32.mrf.mxu0
        %v1582 = vadd.f32 0.0, %v1581
        %v1583 = vpop.f32.mrf.mxu0
        %1584 = vmatprep.mubr.bf16.mxu0 0
        %1585 = vmatmul.mubr.bf16.gmra.mxu0 %v1335
        %v1586 = vpop.f32.mrf.mxu0
        %v1587 = vadd.f32 0.0, %v1586
        %v1588 = vpop.f32.mrf.mxu0
        %v1589 = vpop.f32.mrf.mxu0
        %v1590 = vadd.f32 0.0, %v1589
        %v1591 = vpop.f32.mrf.mxu0
        %1592 = vmatprep.mubr.bf16.mxu0 0
        %1593 = vmatmul.mubr.bf16.gmra.mxu0 %v1336
        %v1594 = vpop.f32.mrf.mxu0
        %v1595 = vadd.f32 0.0, %v1594
        %v1596 = vpop.f32.mrf.mxu0
        %v1597 = vpop.f32.mrf.mxu0
        %v1598 = vadd.f32 0.0, %v1597
        %v1599 = vpop.f32.mrf.mxu0
        %1600 = vmatprep.mubr.bf16.mxu0 0
        %1601 = vmatmul.mubr.bf16.gmra.mxu0 %v1337
        %v1602 = vpop.f32.mrf.mxu0
        %v1603 = vadd.f32 0.0, %v1602
        %v1604 = vpop.f32.mrf.mxu0
        %v1605 = vpop.f32.mrf.mxu0
        %v1606 = vadd.f32 0.0, %v1605
        %v1607 = vpop.f32.mrf.mxu0
        %1608 = vmatprep.mubr.bf16.mxu0 0
        %1609 = vmatmul.mubr.bf16.gmra.mxu0 %v1338
        %v1610 = vpop.f32.mrf.mxu0
        %v1611 = vadd.f32 0.0, %v1610
        %v1612 = vpop.f32.mrf.mxu0
        %v1613 = vpop.f32.mrf.mxu0
        %v1614 = vadd.f32 0.0, %v1613
        %v1615 = vpop.f32.mrf.mxu0
        %1616 = vmatprep.mubr.bf16.mxu0 0
        %1617 = vmatmul.mubr.bf16.gmra.mxu0 %v1339
        %v1618 = vpop.f32.mrf.mxu0
        %v1619 = vadd.f32 0.0, %v1618
        %v1620 = vpop.f32.mrf.mxu0
        %v1621 = vpop.f32.mrf.mxu0
        %v1622 = vadd.f32 0.0, %v1621
        %v1623 = vpop.f32.mrf.mxu0
        %1624 = vmatprep.mubr.bf16.mxu0 0
        %1625 = vmatmul.mubr.bf16.gmra.mxu0 %v1340
        %v1626 = vpop.f32.mrf.mxu0
        %v1627 = vadd.f32 0.0, %v1626
        %v1628 = vpop.f32.mrf.mxu0
        %v1629 = vpop.f32.mrf.mxu0
        %v1630 = vadd.f32 0.0, %v1629
        %v1631 = vpop.f32.mrf.mxu0
        %1632 = vmatprep.mubr.bf16.mxu0 0
        %1633 = vmatmul.mubr.bf16.gmra.mxu0 %v1341
        %v1634 = vpop.f32.mrf.mxu0
        %v1635 = vadd.f32 0.0, %v1634
        %v1636 = vpop.f32.mrf.mxu0
        %v1637 = vpop.f32.mrf.mxu0
        %v1638 = vadd.f32 0.0, %v1637
        %v1639 = vpop.f32.mrf.mxu0
        %1640 = vmatprep.mubr.bf16.mxu0 0
        %1641 = vmatmul.mubr.bf16.gmra.mxu0 %v1342
        %v1642 = vpop.f32.mrf.mxu0
        %v1643 = vadd.f32 0.0, %v1642
        %v1644 = vpop.f32.mrf.mxu0
        %v1645 = vpop.f32.mrf.mxu0
        %v1646 = vadd.f32 0.0, %v1645
        %v1647 = vpop.f32.mrf.mxu0
        %1648 = vmatprep.mubr.bf16.mxu0 0
        %1649 = vmatmul.mubr.bf16.gmra.mxu0 %v1343
        %v1650 = vpop.f32.mrf.mxu0
        %v1651 = vadd.f32 0.0, %v1650
        %v1652 = vpop.f32.mrf.mxu0
        %v1653 = vpop.f32.mrf.mxu0
        %v1654 = vadd.f32 0.0, %v1653
        %v1655 = vpop.f32.mrf.mxu0
        %1656 = vmatprep.mubr.bf16.mxu0 0
        %1657 = vmatmul.mubr.bf16.gmra.mxu0 %v1344
        %v1658 = vpop.f32.mrf.mxu0
        %v1659 = vadd.f32 0.0, %v1658
        %v1660 = vpop.f32.mrf.mxu0
        %v1661 = vpop.f32.mrf.mxu0
        %v1662 = vadd.f32 0.0, %v1661
        %v1663 = vpop.f32.mrf.mxu0
        %1664 = vmatprep.mubr.bf16.mxu0 0
        %1665 = vmatmul.mubr.bf16.gmra.mxu0 %v1345
        %v1666 = vpop.f32.mrf.mxu0
        %v1667 = vadd.f32 0.0, %v1666
        %v1668 = vpop.f32.mrf.mxu0
        %v1669 = vpop.f32.mrf.mxu0
        %v1670 = vadd.f32 0.0, %v1669
        %v1671 = vpop.f32.mrf.mxu0
        %1672 = vmatprep.mubr.bf16.mxu0 0
        %1673 = vmatmul.mubr.bf16.gmra.mxu0 %v1346
        %v1674 = vpop.f32.mrf.mxu0
        %v1675 = vadd.f32 0.0, %v1674
        %v1676 = vpop.f32.mrf.mxu0
        %v1677 = vpop.f32.mrf.mxu0
        %v1678 = vadd.f32 0.0, %v1677
        %v1679 = vpop.f32.mrf.mxu0
        %1680 = vmatprep.mubr.bf16.mxu0 0
        %1681 = vmatmul.mubr.bf16.gmra.mxu0 %v1347
        %v1682 = vpop.f32.mrf.mxu0
        %v1683 = vadd.f32 0.0, %v1682
        %v1684 = vpop.f32.mrf.mxu0
        %v1685 = vpop.f32.mrf.mxu0
        %v1686 = vadd.f32 0.0, %v1685
        %v1687 = vpop.f32.mrf.mxu0
        %1688 = vmatprep.mubr.bf16.mxu0 0
        %1689 = vmatmul.mubr.bf16.gmra.mxu0 %v1348
        %v1690 = vpop.f32.mrf.mxu0
        %v1691 = vadd.f32 0.0, %v1690
        %v1692 = vpop.f32.mrf.mxu0
        %v1693 = vpop.f32.mrf.mxu0
        %v1694 = vadd.f32 0.0, %v1693
        %v1695 = vpop.f32.mrf.mxu0
        %1696 = vmatprep.mubr.bf16.mxu0 0
        %1697 = vmatmul.mubr.bf16.gmra.mxu0 %v1349
        %v1698 = vpop.f32.mrf.mxu0
        %v1699 = vadd.f32 0.0, %v1698
        %v1700 = vpop.f32.mrf.mxu0
        %v1701 = vpop.f32.mrf.mxu0
        %v1702 = vadd.f32 0.0, %v1701
        %v1703 = vpop.f32.mrf.mxu0
        %1704 = vmatprep.mubr.bf16.mxu0 0
        %1705 = vmatmul.mubr.bf16.gmra.mxu0 %v1350
        %v1706 = vpop.f32.mrf.mxu0
        %v1707 = vadd.f32 0.0, %v1706
        %v1708 = vpop.f32.mrf.mxu0
        %v1709 = vpop.f32.mrf.mxu0
        %v1710 = vadd.f32 0.0, %v1709
        %v1711 = vpop.f32.mrf.mxu0
        %1712 = vmatprep.mubr.bf16.mxu0 0
        %1713 = vmatmul.mubr.bf16.gmra.mxu0 %v1351
        %v1714 = vpop.f32.mrf.mxu0
        %v1715 = vadd.f32 0.0, %v1714
        %v1716 = vpop.f32.mrf.mxu0
        %v1717 = vpop.f32.mrf.mxu0
        %v1718 = vadd.f32 0.0, %v1717
        %v1719 = vpop.f32.mrf.mxu0
        %1720 = vdwg.mxu0
        %v1737 = vunpack.c.l.b16 %v1096
        %v1738 = vunpack.c.l.b16 %v1097
        %v1739 = vunpack.c.l.b16 %v1098
        %v1740 = vunpack.c.l.b16 %v1099
        %v1741 = vunpack.c.l.b16 %v1100
        %v1742 = vunpack.c.l.b16 %v1101
        %v1743 = vunpack.c.l.b16 %v1102
        %v1744 = vunpack.c.l.b16 %v1103
        %v1745 = vunpack.c.l.b16 %v1104
        %v1746 = vunpack.c.l.b16 %v1105
        %v1747 = vunpack.c.l.b16 %v1106
        %v1748 = vunpack.c.l.b16 %v1107
        %v1749 = vunpack.c.l.b16 %v1108
        %v1750 = vunpack.c.l.b16 %v1109
        %v1751 = vunpack.c.l.b16 %v1110
        %v1752 = vunpack.c.l.b16 %v1111
        %v1753 = vpack.c.b16 %v1738, %v1737
        %v1754 = vpack.c.b16 %v1740, %v1739
        %v1755 = vpack.c.b16 %v1742, %v1741
        %v1756 = vpack.c.b16 %v1744, %v1743
        %v1757 = vpack.c.b16 %v1746, %v1745
        %v1758 = vpack.c.b16 %v1748, %v1747
        %v1759 = vpack.c.b16 %v1750, %v1749
        %v1760 = vpack.c.b16 %v1752, %v1751
        %1769 = vmatprep.subr.bf16.mxu0 0
        %1770 = vmatpush1.bf16.msra.mxu0 %v1760
        %1771 = vmatprep.subr.bf16.mxu0 0
        %1772 = vmatpush1.bf16.msra.mxu0 %v1759
        %1773 = vmatprep.subr.bf16.mxu0 0
        %1774 = vmatpush1.bf16.msra.mxu0 %v1758
        %1775 = vmatprep.subr.bf16.mxu0 0
        %1776 = vmatpush1.bf16.msra.mxu0 %v1757
        %1777 = vmatprep.subr.bf16.mxu0 0
        %1778 = vmatpush1.bf16.msra.mxu0 %v1756
        %1779 = vmatprep.subr.bf16.mxu0 0
        %1780 = vmatpush1.bf16.msra.mxu0 %v1755
        %1781 = vmatprep.subr.bf16.mxu0 0
        %1782 = vmatpush1.bf16.msra.mxu0 %v1754
        %1783 = vmatprep.subr.bf16.mxu0 0
        %1784 = vmatpush1.bf16.msra.mxu0 %v1753
        %1785 = vmatprep.subr.bf16.mxu0 0
        %1786 = vmatpush2.bf16.msra.mxu0 0
        %1787 = vmatprep.subr.bf16.mxu0 0
        %1788 = vmatpush2.bf16.msra.mxu0 0
        %1789 = vmatprep.subr.bf16.mxu0 0
        %1790 = vmatpush2.bf16.msra.mxu0 0
        %1791 = vmatprep.subr.bf16.mxu0 0
        %1792 = vmatpush2.bf16.msra.mxu0 0
        %1793 = vmatprep.subr.bf16.mxu0 0
        %1794 = vmatpush2.bf16.msra.mxu0 0
        %1795 = vmatprep.subr.bf16.mxu0 0
        %1796 = vmatpush2.bf16.msra.mxu0 0
        %1797 = vmatprep.subr.bf16.mxu0 0
        %1798 = vmatpush2.bf16.msra.mxu0 0
        %1799 = vmatprep.subr.bf16.mxu0 0
        %1800 = vmatpush2.bf16.msra.mxu0 0
        %1801 = vmatprep.mubr.bf16.mxu0 0
        %1802 = vmatmul.mubr.bf16.gmra.mxu0 %v1064
        %v1803 = vpop.f32.mrf.mxu0
        %v1804 = vadd.f32 %v1467, %v1803
        %v1805 = vpop.f32.mrf.mxu0
        %v1806 = vpop.f32.mrf.mxu0
        %v1807 = vadd.f32 %v1470, %v1806
        %v1808 = vpop.f32.mrf.mxu0
        %1809 = vmatprep.mubr.bf16.mxu0 0
        %1810 = vmatmul.mubr.bf16.gmra.mxu0 %v1065
        %v1811 = vpop.f32.mrf.mxu0
        %v1812 = vadd.f32 %v1475, %v1811
        %v1813 = vpop.f32.mrf.mxu0
        %v1814 = vpop.f32.mrf.mxu0
        %v1815 = vadd.f32 %v1478, %v1814
        %v1816 = vpop.f32.mrf.mxu0
        %1817 = vmatprep.mubr.bf16.mxu0 0
        %1818 = vmatmul.mubr.bf16.gmra.mxu0 %v1066
        %v1819 = vpop.f32.mrf.mxu0
        %v1820 = vadd.f32 %v1483, %v1819
        %v1821 = vpop.f32.mrf.mxu0
        %v1822 = vpop.f32.mrf.mxu0
        %v1823 = vadd.f32 %v1486, %v1822
        %v1824 = vpop.f32.mrf.mxu0
        %1825 = vmatprep.mubr.bf16.mxu0 0
        %1826 = vmatmul.mubr.bf16.gmra.mxu0 %v1067
        %v1827 = vpop.f32.mrf.mxu0
        %v1828 = vadd.f32 %v1491, %v1827
        %v1829 = vpop.f32.mrf.mxu0
        %v1830 = vpop.f32.mrf.mxu0
        %v1831 = vadd.f32 %v1494, %v1830
        %v1832 = vpop.f32.mrf.mxu0
        %1833 = vmatprep.mubr.bf16.mxu0 0
        %1834 = vmatmul.mubr.bf16.gmra.mxu0 %v1068
        %v1835 = vpop.f32.mrf.mxu0
        %v1836 = vadd.f32 %v1499, %v1835
        %v1837 = vpop.f32.mrf.mxu0
        %v1838 = vpop.f32.mrf.mxu0
        %v1839 = vadd.f32 %v1502, %v1838
        %v1840 = vpop.f32.mrf.mxu0
        %1841 = vmatprep.mubr.bf16.mxu0 0
        %1842 = vmatmul.mubr.bf16.gmra.mxu0 %v1069
        %v1843 = vpop.f32.mrf.mxu0
        %v1844 = vadd.f32 %v1507, %v1843
        %v1845 = vpop.f32.mrf.mxu0
        %v1846 = vpop.f32.mrf.mxu0
        %v1847 = vadd.f32 %v1510, %v1846
        %v1848 = vpop.f32.mrf.mxu0
        %1849 = vmatprep.mubr.bf16.mxu0 0
        %1850 = vmatmul.mubr.bf16.gmra.mxu0 %v1070
        %v1851 = vpop.f32.mrf.mxu0
        %v1852 = vadd.f32 %v1515, %v1851
        %v1853 = vpop.f32.mrf.mxu0
        %v1854 = vpop.f32.mrf.mxu0
        %v1855 = vadd.f32 %v1518, %v1854
        %v1856 = vpop.f32.mrf.mxu0
        %1857 = vmatprep.mubr.bf16.mxu0 0
        %1858 = vmatmul.mubr.bf16.gmra.mxu0 %v1071
        %v1859 = vpop.f32.mrf.mxu0
        %v1860 = vadd.f32 %v1523, %v1859
        %v1861 = vpop.f32.mrf.mxu0
        %v1862 = vpop.f32.mrf.mxu0
        %v1863 = vadd.f32 %v1526, %v1862
        %v1864 = vpop.f32.mrf.mxu0
        %1865 = vmatprep.mubr.bf16.mxu0 0
        %1866 = vmatmul.mubr.bf16.gmra.mxu0 %v1072
        %v1867 = vpop.f32.mrf.mxu0
        %v1868 = vadd.f32 %v1531, %v1867
        %v1869 = vpop.f32.mrf.mxu0
        %v1870 = vpop.f32.mrf.mxu0
        %v1871 = vadd.f32 %v1534, %v1870
        %v1872 = vpop.f32.mrf.mxu0
        %1873 = vmatprep.mubr.bf16.mxu0 0
        %1874 = vmatmul.mubr.bf16.gmra.mxu0 %v1073
        %v1875 = vpop.f32.mrf.mxu0
        %v1876 = vadd.f32 %v1539, %v1875
        %v1877 = vpop.f32.mrf.mxu0
        %v1878 = vpop.f32.mrf.mxu0
        %v1879 = vadd.f32 %v1542, %v1878
        %v1880 = vpop.f32.mrf.mxu0
        %1881 = vmatprep.mubr.bf16.mxu0 0
        %1882 = vmatmul.mubr.bf16.gmra.mxu0 %v1074
        %v1883 = vpop.f32.mrf.mxu0
        %v1884 = vadd.f32 %v1547, %v1883
        %v1885 = vpop.f32.mrf.mxu0
        %v1886 = vpop.f32.mrf.mxu0
        %v1887 = vadd.f32 %v1550, %v1886
        %v1888 = vpop.f32.mrf.mxu0
        %1889 = vmatprep.mubr.bf16.mxu0 0
        %1890 = vmatmul.mubr.bf16.gmra.mxu0 %v1075
        %v1891 = vpop.f32.mrf.mxu0
        %v1892 = vadd.f32 %v1555, %v1891
        %v1893 = vpop.f32.mrf.mxu0
        %v1894 = vpop.f32.mrf.mxu0
        %v1895 = vadd.f32 %v1558, %v1894
        %v1896 = vpop.f32.mrf.mxu0
        %1897 = vmatprep.mubr.bf16.mxu0 0
        %1898 = vmatmul.mubr.bf16.gmra.mxu0 %v1076
        %v1899 = vpop.f32.mrf.mxu0
        %v1900 = vadd.f32 %v1563, %v1899
        %v1901 = vpop.f32.mrf.mxu0
        %v1902 = vpop.f32.mrf.mxu0
        %v1903 = vadd.f32 %v1566, %v1902
        %v1904 = vpop.f32.mrf.mxu0
        %1905 = vmatprep.mubr.bf16.mxu0 0
        %1906 = vmatmul.mubr.bf16.gmra.mxu0 %v1077
        %v1907 = vpop.f32.mrf.mxu0
        %v1908 = vadd.f32 %v1571, %v1907
        %v1909 = vpop.f32.mrf.mxu0
        %v1910 = vpop.f32.mrf.mxu0
        %v1911 = vadd.f32 %v1574, %v1910
        %v1912 = vpop.f32.mrf.mxu0
        %1913 = vmatprep.mubr.bf16.mxu0 0
        %1914 = vmatmul.mubr.bf16.gmra.mxu0 %v1078
        %v1915 = vpop.f32.mrf.mxu0
        %v1916 = vadd.f32 %v1579, %v1915
        %v1917 = vpop.f32.mrf.mxu0
        %v1918 = vpop.f32.mrf.mxu0
        %v1919 = vadd.f32 %v1582, %v1918
        %v1920 = vpop.f32.mrf.mxu0
        %1921 = vmatprep.mubr.bf16.mxu0 0
        %1922 = vmatmul.mubr.bf16.gmra.mxu0 %v1079
        %v1923 = vpop.f32.mrf.mxu0
        %v1924 = vadd.f32 %v1587, %v1923
        %v1925 = vpop.f32.mrf.mxu0
        %v1926 = vpop.f32.mrf.mxu0
        %v1927 = vadd.f32 %v1590, %v1926
        %v1928 = vpop.f32.mrf.mxu0
        %1929 = vmatprep.mubr.bf16.mxu0 0
        %1930 = vmatmul.mubr.bf16.gmra.mxu0 %v1080
        %v1931 = vpop.f32.mrf.mxu0
        %v1932 = vadd.f32 %v1595, %v1931
        %v1933 = vpop.f32.mrf.mxu0
        %v1934 = vpop.f32.mrf.mxu0
        %v1935 = vadd.f32 %v1598, %v1934
        %v1936 = vpop.f32.mrf.mxu0
        %1937 = vmatprep.mubr.bf16.mxu0 0
        %1938 = vmatmul.mubr.bf16.gmra.mxu0 %v1081
        %v1939 = vpop.f32.mrf.mxu0
        %v1940 = vadd.f32 %v1603, %v1939
        %v1941 = vpop.f32.mrf.mxu0
        %v1942 = vpop.f32.mrf.mxu0
        %v1943 = vadd.f32 %v1606, %v1942
        %v1944 = vpop.f32.mrf.mxu0
        %1945 = vmatprep.mubr.bf16.mxu0 0
        %1946 = vmatmul.mubr.bf16.gmra.mxu0 %v1082
        %v1947 = vpop.f32.mrf.mxu0
        %v1948 = vadd.f32 %v1611, %v1947
        %v1949 = vpop.f32.mrf.mxu0
        %v1950 = vpop.f32.mrf.mxu0
        %v1951 = vadd.f32 %v1614, %v1950
        %v1952 = vpop.f32.mrf.mxu0
        %1953 = vmatprep.mubr.bf16.mxu0 0
        %1954 = vmatmul.mubr.bf16.gmra.mxu0 %v1083
        %v1955 = vpop.f32.mrf.mxu0
        %v1956 = vadd.f32 %v1619, %v1955
        %v1957 = vpop.f32.mrf.mxu0
        %v1958 = vpop.f32.mrf.mxu0
        %v1959 = vadd.f32 %v1622, %v1958
        %v1960 = vpop.f32.mrf.mxu0
        %1961 = vmatprep.mubr.bf16.mxu0 0
        %1962 = vmatmul.mubr.bf16.gmra.mxu0 %v1084
        %v1963 = vpop.f32.mrf.mxu0
        %v1964 = vadd.f32 %v1627, %v1963
        %v1965 = vpop.f32.mrf.mxu0
        %v1966 = vpop.f32.mrf.mxu0
        %v1967 = vadd.f32 %v1630, %v1966
        %v1968 = vpop.f32.mrf.mxu0
        %1969 = vmatprep.mubr.bf16.mxu0 0
        %1970 = vmatmul.mubr.bf16.gmra.mxu0 %v1085
        %v1971 = vpop.f32.mrf.mxu0
        %v1972 = vadd.f32 %v1635, %v1971
        %v1973 = vpop.f32.mrf.mxu0
        %v1974 = vpop.f32.mrf.mxu0
        %v1975 = vadd.f32 %v1638, %v1974
        %v1976 = vpop.f32.mrf.mxu0
        %1977 = vmatprep.mubr.bf16.mxu0 0
        %1978 = vmatmul.mubr.bf16.gmra.mxu0 %v1086
        %v1979 = vpop.f32.mrf.mxu0
        %v1980 = vadd.f32 %v1643, %v1979
        %v1981 = vpop.f32.mrf.mxu0
        %v1982 = vpop.f32.mrf.mxu0
        %v1983 = vadd.f32 %v1646, %v1982
        %v1984 = vpop.f32.mrf.mxu0
        %1985 = vmatprep.mubr.bf16.mxu0 0
        %1986 = vmatmul.mubr.bf16.gmra.mxu0 %v1087
        %v1987 = vpop.f32.mrf.mxu0
        %v1988 = vadd.f32 %v1651, %v1987
        %v1989 = vpop.f32.mrf.mxu0
        %v1990 = vpop.f32.mrf.mxu0
        %v1991 = vadd.f32 %v1654, %v1990
        %v1992 = vpop.f32.mrf.mxu0
        %1993 = vmatprep.mubr.bf16.mxu0 0
        %1994 = vmatmul.mubr.bf16.gmra.mxu0 %v1088
        %v1995 = vpop.f32.mrf.mxu0
        %v1996 = vadd.f32 %v1659, %v1995
        %v1997 = vpop.f32.mrf.mxu0
        %v1998 = vpop.f32.mrf.mxu0
        %v1999 = vadd.f32 %v1662, %v1998
        %v2000 = vpop.f32.mrf.mxu0
        %2001 = vmatprep.mubr.bf16.mxu0 0
        %2002 = vmatmul.mubr.bf16.gmra.mxu0 %v1089
        %v2003 = vpop.f32.mrf.mxu0
        %v2004 = vadd.f32 %v1667, %v2003
        %v2005 = vpop.f32.mrf.mxu0
        %v2006 = vpop.f32.mrf.mxu0
        %v2007 = vadd.f32 %v1670, %v2006
        %v2008 = vpop.f32.mrf.mxu0
        %2009 = vmatprep.mubr.bf16.mxu0 0
        %2010 = vmatmul.mubr.bf16.gmra.mxu0 %v1090
        %v2011 = vpop.f32.mrf.mxu0
        %v2012 = vadd.f32 %v1675, %v2011
        %v2013 = vpop.f32.mrf.mxu0
        %v2014 = vpop.f32.mrf.mxu0
        %v2015 = vadd.f32 %v1678, %v2014
        %v2016 = vpop.f32.mrf.mxu0
        %2017 = vmatprep.mubr.bf16.mxu0 0
        %2018 = vmatmul.mubr.bf16.gmra.mxu0 %v1091
        %v2019 = vpop.f32.mrf.mxu0
        %v2020 = vadd.f32 %v1683, %v2019
        %v2021 = vpop.f32.mrf.mxu0
        %v2022 = vpop.f32.mrf.mxu0
        %v2023 = vadd.f32 %v1686, %v2022
        %v2024 = vpop.f32.mrf.mxu0
        %2025 = vmatprep.mubr.bf16.mxu0 0
        %2026 = vmatmul.mubr.bf16.gmra.mxu0 %v1092
        %v2027 = vpop.f32.mrf.mxu0
        %v2028 = vadd.f32 %v1691, %v2027
        %v2029 = vpop.f32.mrf.mxu0
        %v2030 = vpop.f32.mrf.mxu0
        %v2031 = vadd.f32 %v1694, %v2030
        %v2032 = vpop.f32.mrf.mxu0
        %2033 = vmatprep.mubr.bf16.mxu0 0
        %2034 = vmatmul.mubr.bf16.gmra.mxu0 %v1093
        %v2035 = vpop.f32.mrf.mxu0
        %v2036 = vadd.f32 %v1699, %v2035
        %v2037 = vpop.f32.mrf.mxu0
        %v2038 = vpop.f32.mrf.mxu0
        %v2039 = vadd.f32 %v1702, %v2038
        %v2040 = vpop.f32.mrf.mxu0
        %2041 = vmatprep.mubr.bf16.mxu0 0
        %2042 = vmatmul.mubr.bf16.gmra.mxu0 %v1094
        %v2043 = vpop.f32.mrf.mxu0
        %v2044 = vadd.f32 %v1707, %v2043
        %v2045 = vpop.f32.mrf.mxu0
        %v2046 = vpop.f32.mrf.mxu0
        %v2047 = vadd.f32 %v1710, %v2046
        %v2048 = vpop.f32.mrf.mxu0
        %2049 = vmatprep.mubr.bf16.mxu0 0
        %2050 = vmatmul.mubr.bf16.gmra.mxu0 %v1095
        %v2051 = vpop.f32.mrf.mxu0
        %v2052 = vadd.f32 %v1715, %v2051
        %v2053 = vpop.f32.mrf.mxu0
        %v2054 = vpop.f32.mrf.mxu0
        %v2055 = vadd.f32 %v1718, %v2054
        %v2056 = vpop.f32.mrf.mxu0
        %2057 = vdwg.mxu0
        %v2058 = vld [vmem:[%s6] sm:$0x1]
        %v2060 = vlaneseq
        %v2061 = vshrl.u32 %v2060, 7
        %v2062 = vsub.s32 0, %v2061
        %v2063 = vrot.slane %v2058, %v2062
        %v2065 = vadd.f32 %v1804, %v2063
        %v2066 = vadd.f32 %v1807, %v2063
        %v2067 = vadd.f32 %v1812, %v2063
        %v2068 = vadd.f32 %v1815, %v2063
        %v2069 = vadd.f32 %v1820, %v2063
        %v2070 = vadd.f32 %v1823, %v2063
        %v2071 = vadd.f32 %v1828, %v2063
        %v2072 = vadd.f32 %v1831, %v2063
        %v2073 = vadd.f32 %v1836, %v2063
        %v2074 = vadd.f32 %v1839, %v2063
        %v2075 = vadd.f32 %v1844, %v2063
        %v2076 = vadd.f32 %v1847, %v2063
        %v2077 = vadd.f32 %v1852, %v2063
        %v2078 = vadd.f32 %v1855, %v2063
        %v2079 = vadd.f32 %v1860, %v2063
        %v2080 = vadd.f32 %v1863, %v2063
        %v2081 = vadd.f32 %v1868, %v2063
        %v2082 = vadd.f32 %v1871, %v2063
        %v2083 = vadd.f32 %v1876, %v2063
        %v2084 = vadd.f32 %v1879, %v2063
        %v2085 = vadd.f32 %v1884, %v2063
        %v2086 = vadd.f32 %v1887, %v2063
        %v2087 = vadd.f32 %v1892, %v2063
        %v2088 = vadd.f32 %v1895, %v2063
        %v2089 = vadd.f32 %v1900, %v2063
        %v2090 = vadd.f32 %v1903, %v2063
        %v2091 = vadd.f32 %v1908, %v2063
        %v2092 = vadd.f32 %v1911, %v2063
        %v2093 = vadd.f32 %v1916, %v2063
        %v2094 = vadd.f32 %v1919, %v2063
        %v2095 = vadd.f32 %v1924, %v2063
        %v2096 = vadd.f32 %v1927, %v2063
        %v2097 = vadd.f32 %v1932, %v2063
        %v2098 = vadd.f32 %v1935, %v2063
        %v2099 = vadd.f32 %v1940, %v2063
        %v2100 = vadd.f32 %v1943, %v2063
        %v2101 = vadd.f32 %v1948, %v2063
        %v2102 = vadd.f32 %v1951, %v2063
        %v2103 = vadd.f32 %v1956, %v2063
        %v2104 = vadd.f32 %v1959, %v2063
        %v2105 = vadd.f32 %v1964, %v2063
        %v2106 = vadd.f32 %v1967, %v2063
        %v2107 = vadd.f32 %v1972, %v2063
        %v2108 = vadd.f32 %v1975, %v2063
        %v2109 = vadd.f32 %v1980, %v2063
        %v2110 = vadd.f32 %v1983, %v2063
        %v2111 = vadd.f32 %v1988, %v2063
        %v2112 = vadd.f32 %v1991, %v2063
        %v2113 = vadd.f32 %v1996, %v2063
        %v2114 = vadd.f32 %v1999, %v2063
        %v2115 = vadd.f32 %v2004, %v2063
        %v2116 = vadd.f32 %v2007, %v2063
        %v2117 = vadd.f32 %v2012, %v2063
        %v2118 = vadd.f32 %v2015, %v2063
        %v2119 = vadd.f32 %v2020, %v2063
        %v2120 = vadd.f32 %v2023, %v2063
        %v2121 = vadd.f32 %v2028, %v2063
        %v2122 = vadd.f32 %v2031, %v2063
        %v2123 = vadd.f32 %v2036, %v2063
        %v2124 = vadd.f32 %v2039, %v2063
        %v2125 = vadd.f32 %v2044, %v2063
        %v2126 = vadd.f32 %v2047, %v2063
        %v2127 = vadd.f32 %v2052, %v2063
        %v2128 = vadd.f32 %v2055, %v2063
        %2129 = vst [vmem:[%s379] sm:$0xff] %v2065
        %2130 = vst [vmem:[%s379 + $0x8] sm:$0xff] %v2066
        %2131 = vst [vmem:[%s379 + $0x10] sm:$0xff] %v2067
        %2132 = vst [vmem:[%s379 + $0x18] sm:$0xff] %v2068
        %2133 = vst [vmem:[%s379 + $0x20] sm:$0xff] %v2069
        %2134 = vst [vmem:[%s379 + $0x28] sm:$0xff] %v2070
        %2135 = vst [vmem:[%s379 + $0x30] sm:$0xff] %v2071
        %2136 = vst [vmem:[%s379 + $0x38] sm:$0xff] %v2072
        %2137 = vst [vmem:[%s379 + $0x40] sm:$0xff] %v2073
        %2138 = vst [vmem:[%s379 + $0x48] sm:$0xff] %v2074
        %2139 = vst [vmem:[%s379 + $0x50] sm:$0xff] %v2075
        %2140 = vst [vmem:[%s379 + $0x58] sm:$0xff] %v2076
        %2141 = vst [vmem:[%s379 + $0x60] sm:$0xff] %v2077
        %2142 = vst [vmem:[%s379 + $0x68] sm:$0xff] %v2078
        %2143 = vst [vmem:[%s379 + $0x70] sm:$0xff] %v2079
        %2144 = vst [vmem:[%s379 + $0x78] sm:$0xff] %v2080
        %2145 = vst [vmem:[%s379 + $0x80] sm:$0xff] %v2081
        %2146 = vst [vmem:[%s379 + $0x88] sm:$0xff] %v2082
        %2147 = vst [vmem:[%s379 + $0x90] sm:$0xff] %v2083
        %2148 = vst [vmem:[%s379 + $0x98] sm:$0xff] %v2084
        %2149 = vst [vmem:[%s379 + $0xa0] sm:$0xff] %v2085
        %2150 = vst [vmem:[%s379 + $0xa8] sm:$0xff] %v2086
        %2151 = vst [vmem:[%s379 + $0xb0] sm:$0xff] %v2087
        %2152 = vst [vmem:[%s379 + $0xb8] sm:$0xff] %v2088
        %2153 = vst [vmem:[%s379 + $0xc0] sm:$0xff] %v2089
        %2154 = vst [vmem:[%s379 + $0xc8] sm:$0xff] %v2090
        %2155 = vst [vmem:[%s379 + $0xd0] sm:$0xff] %v2091
        %2156 = vst [vmem:[%s379 + $0xd8] sm:$0xff] %v2092
        %2157 = vst [vmem:[%s379 + $0xe0] sm:$0xff] %v2093
        %2158 = vst [vmem:[%s379 + $0xe8] sm:$0xff] %v2094
        %2159 = vst [vmem:[%s379 + $0xf0] sm:$0xff] %v2095
        %2160 = vst [vmem:[%s379 + $0xf8] sm:$0xff] %v2096
        %2161 = vst [vmem:[%s379 + $0x100] sm:$0xff] %v2097
        %2162 = vst [vmem:[%s379 + $0x108] sm:$0xff] %v2098
        %2163 = vst [vmem:[%s379 + $0x110] sm:$0xff] %v2099
        %2164 = vst [vmem:[%s379 + $0x118] sm:$0xff] %v2100
        %2165 = vst [vmem:[%s379 + $0x120] sm:$0xff] %v2101
        %2166 = vst [vmem:[%s379 + $0x128] sm:$0xff] %v2102
        %2167 = vst [vmem:[%s379 + $0x130] sm:$0xff] %v2103
        %2168 = vst [vmem:[%s379 + $0x138] sm:$0xff] %v2104
        %2169 = vst [vmem:[%s379 + $0x140] sm:$0xff] %v2105
        %2170 = vst [vmem:[%s379 + $0x148] sm:$0xff] %v2106
        %2171 = vst [vmem:[%s379 + $0x150] sm:$0xff] %v2107
        %2172 = vst [vmem:[%s379 + $0x158] sm:$0xff] %v2108
        %2173 = vst [vmem:[%s379 + $0x160] sm:$0xff] %v2109
        %2174 = vst [vmem:[%s379 + $0x168] sm:$0xff] %v2110
        %2175 = vst [vmem:[%s379 + $0x170] sm:$0xff] %v2111
        %2176 = vst [vmem:[%s379 + $0x178] sm:$0xff] %v2112
        %2177 = vst [vmem:[%s379 + $0x180] sm:$0xff] %v2113
        %2178 = vst [vmem:[%s379 + $0x188] sm:$0xff] %v2114
        %2179 = vst [vmem:[%s379 + $0x190] sm:$0xff] %v2115
        %2180 = vst [vmem:[%s379 + $0x198] sm:$0xff] %v2116
        %2181 = vst [vmem:[%s379 + $0x1a0] sm:$0xff] %v2117
        %2182 = vst [vmem:[%s379 + $0x1a8] sm:$0xff] %v2118
        %2183 = vst [vmem:[%s379 + $0x1b0] sm:$0xff] %v2119
        %2184 = vst [vmem:[%s379 + $0x1b8] sm:$0xff] %v2120
        %2185 = vst [vmem:[%s379 + $0x1c0] sm:$0xff] %v2121
        %2186 = vst [vmem:[%s379 + $0x1c8] sm:$0xff] %v2122
        %2187 = vst [vmem:[%s379 + $0x1d0] sm:$0xff] %v2123
        %2188 = vst [vmem:[%s379 + $0x1d8] sm:$0xff] %v2124
        %2189 = vst [vmem:[%s379 + $0x1e0] sm:$0xff] %v2125
        %2190 = vst [vmem:[%s379 + $0x1e8] sm:$0xff] %v2126
        %2191 = vst [vmem:[%s379 + $0x1f0] sm:$0xff] %v2127
        %2192 = vst [vmem:[%s379 + $0x1f8] sm:$0xff] %v2128
        %s2193 = sand.u32 %s193, 1
        %s2194 = scalar_lea.sflag [#allocation4], %s2193
        %s2195 = sand.u32 %s193, 1
        %s2196 = smul.addr %s2195, 512
        %s2197 = scalar_lea.vmem [#allocation11], %s2196
        // Predicated region
        $region69: #{tpu_custom_call.1} parent=47 // pred_check
          %p2198 = pneg %p203
        $region70: #{tpu_custom_call.1} parent=47 // pred_check_branch
          %2200 = sbr.rel (%p2198) target = $region72
        $region71: #{tpu_custom_call.1} parent=47 // pred_region
          %s2201 = smul.u32 64, %s28
          %s2203 = ssub.s32 8192, 8192
          %2204 = vsyncadd %s2194, %s2203
          %s2205 = smul.addr %s2201, 128
          %s2206 = scalar_lea.hbm %s7, %s2205
          %s2207 = sshll.u32 %s2197, 4
          %s2208 = int_to_ptr.vmem [resolvable:$true] %s2207
          %2213 = dma.vmem_to_hbm [thread:$0]  %s2208, 8192, %s2206, %s2194, 128, 128, 8
        $region72: #{tpu_custom_call.1} parent=47 // pred_fallthru
          _
      $region48: #{tpu_custom_call.1} parent=5 // pred_fallthru
        _
      %p2214 = scmp.le.s32.totalorder 2, %s23
      // Predicated region
      $region73: #{tpu_custom_call.1} parent=5 // pred_check
        %p2215 = pneg %p2214
      $region74: #{tpu_custom_call.1} parent=5 // pred_check_branch
        %2217 = sbr.rel (%p2215) target = $region76
      $region75: #{tpu_custom_call.1} parent=5 // pred_region
        %s2218 = ssub.s32 %s23, 2
        // Predicated region
        $region77: #{tpu_custom_call.1} parent=75 // pred_check
          %p2219 = pneg %p209
        $region78: #{tpu_custom_call.1} parent=75 // pred_check_branch
          %2221 = sbr.rel (%p2219) target = $region80
        $region79: #{tpu_custom_call.1} parent=75 // pred_region
          %s2222 = sand.u32 %s194, 1
          %s2223 = scalar_lea.sflag [#allocation4], %s2222
          %s2224 = sand.u32 %s194, 1
          %s2225 = smul.addr %s2224, 512
          %s2226 = scalar_lea.vmem [#allocation11], %s2225
          %2227 = dma.done %s2223, 8192
        $region80: #{tpu_custom_call.1} parent=75 // pred_fallthru
          _
      $region76: #{tpu_custom_call.1} parent=5 // pred_fallthru
        _
    $region6: #{tpu_custom_call.1} parent=1 // loop_footer
      %s27 = sadd.s32 1, %s23
    $region7: #{tpu_custom_call.1} parent=1 // loop_footer_branch
      %22 = sbr.rel target = $region3
    $region8: #{tpu_custom_call.1} parent=1 // loop_exit
      _
    %2228 = vsyncpa [#allocation3], 1
    %s2229 = scalar_lea.sflag [#allocation3], 1
    %2230 = vsyncpa %s2229, 1
    %2231 = vsyncpa [#allocation6], 1
    %s2232 = scalar_lea.sflag [#allocation6], 1
    %2233 = vsyncpa %s2232, 1
    %2234 = vsyncpa [#allocation9], 1
    %2235 = vsyncpa [#allocation4], 1
    %s2236 = scalar_lea.sflag [#allocation4], 1
    %2237 = vsyncpa %s2236, 1

</llo_original>
